<compile_context>
chip_gen: v7x
topology: tpu7x:2x2x1
jax: 0.10.0
libtpu: 0.0.40
codegen_flags: <defaults>
</compile_context>

<pallas_src>
import functools

import jax
import jax.numpy as jnp
from jax.experimental import pallas as pl
from jax.experimental.pallas import tpu as pltpu

LANE = 128      # TPU lane width: channel dims padded to a multiple of this (lane-dense stores)
SUBLANE = 8     # f32 sublane tile: padded spatial width rounded up so in-kernel reshapes align


def _round_up(v, m):
    return ((v + m - 1) // m) * m


# --------------------------------------------------------------------------- #
# Pallas kernel: one full Bottleneck block per grid step (one batch image).
# --------------------------------------------------------------------------- #
def _bottleneck_kernel(x_ref, mask_ref, wa_ref, ba_ref, wb_ref, bb_ref,
                       wc_ref, bc_ref, o_ref, a_pad_ref, *,
                       stride, hp, wpp, ho, wo):
    """Fused conv1x1+BN+ReLU -> conv3x3(stride, groups)+BN+ReLU -> conv1x1+BN.

    x_ref    : (1, hp*wpp, Cin)   bf16  spatially zero-padded input, flattened
    mask_ref : (hp*wpp, 1)        f32   1.0 on interior pixels, 0.0 on the pad ring
    wa_ref   : (Cin, Cbp)         bf16  conv-a weight with BN scale folded in
    ba_ref   : (1, Cbp)           f32   conv-a folded BN shift
    wb_ref   : (9, Cbp, Cbp)      bf16  conv-b 3x3 taps (block-diagonal over groups)
    bb_ref   : (1, Cbp)           f32
    wc_ref   : (Cbp, Coutp)       bf16
    bc_ref   : (1, Coutp)         f32
    o_ref    : (1, ho, wo, Coutp) f32
    a_pad_ref: (hp, wpp, Cbp)     f32   VMEM scratch: conv-a activation on the padded frame
    """
    cbp = wa_ref.shape[1]

    # ---- conv a (1x1) + BN + ReLU, computed over the whole zero-padded frame ----
    a = jnp.dot(x_ref[0], wa_ref[...], preferred_element_type=jnp.float32)
    a = jnp.maximum(a + ba_ref[...], 0.0) * mask_ref[...]     # force the pad ring back to 0
    a_pad_ref[...] = a.reshape(hp, wpp, cbp)

    # ---- conv b (3x3, stride, groups) + BN + ReLU: 9 shifted taps from VMEM ----
    acc = jnp.zeros((ho * wo, cbp), jnp.float32)
    for ky in range(3):
        for kx in range(3):
            if stride == 1:
                patch = a_pad_ref[pl.ds(ky, ho), pl.ds(kx, wo), :]
            else:
                patch = a_pad_ref[pl.ds(ky, ho, stride), pl.ds(kx, wo, stride), :]
            patch = patch.reshape(ho * wo, cbp).astype(jnp.bfloat16)
            acc = acc + jnp.dot(patch, wb_ref[3 * ky + kx],
                                preferred_element_type=jnp.float32)
    b = jnp.maximum(acc + bb_ref[...], 0.0).astype(jnp.bfloat16)

    # ---- conv c (1x1) + BN (final BN, no activation) ----------------------------
    c = jnp.dot(b, wc_ref[...], preferred_element_type=jnp.float32) + bc_ref[...]
    o_ref[0] = c.reshape(ho, wo, -1).astype(o_ref.dtype)


# --------------------------------------------------------------------------- #
# Weight packing (BN fold, group expansion, lane padding) -- plain-JAX glue.
# --------------------------------------------------------------------------- #
def _fold_conv_bn(w_oihw, bn, eps=1e-5):
    """Fold eval-mode BatchNorm into the conv: scale -> weight columns, shift -> bias."""
    gamma, beta, mean, var = bn
    scale = gamma / jnp.sqrt(var + eps)
    shift = beta - mean * scale
    w = (w_oihw * scale[:, None, None, None]).astype(jnp.bfloat16)
    return w, shift.astype(jnp.float32)


def _pack_1x1(w, shift, cin_pad, cout_pad):
    """(Cout, Cin, 1, 1) scaled bf16 -> (cin_pad, cout_pad) weight + (1, cout_pad) bias."""
    cout, cin = w.shape[0], w.shape[1]
    w2 = jnp.transpose(w[:, :, 0, 0], (1, 0))
    w2 = jnp.pad(w2, ((0, cin_pad - cin), (0, cout_pad - cout)))
    b2 = jnp.pad(shift, (0, cout_pad - cout)).reshape(1, cout_pad)
    return w2, b2


def _pack_3x3_grouped(w, shift, groups, cin_pad, cout_pad):
    """(Cout, Cin/g, 3, 3) scaled bf16 -> (9, cin_pad, cout_pad) block-diagonal taps."""
    cout, cin_g = w.shape[0], w.shape[1]
    cin, cout_g = cin_g * groups, cout // groups
    wt = jnp.transpose(w, (2, 3, 1, 0))                      # (3, 3, cin_g, cout)
    # TODO(synk): for large group counts keep per-group (Cin_g, Cout_g) tiles + a group grid
    # axis instead of this dense block-diagonal expansion (it multiplies zeros).
    full = jnp.zeros((3, 3, cin, cout), w.dtype)
    for g in range(groups):
        full = full.at[:, :, g * cin_g:(g + 1) * cin_g,
                       g * cout_g:(g + 1) * cout_g].set(wt[..., g * cout_g:(g + 1) * cout_g])
    full = jnp.pad(full, ((0, 0), (0, 0), (0, cin_pad - cin), (0, cout_pad - cout)))
    b2 = jnp.pad(shift, (0, cout_pad - cout)).reshape(1, cout_pad)
    return full.reshape(9, cin_pad, cout_pad), b2


# --------------------------------------------------------------------------- #
# Public forward: matches PyTorch Bottleneck.forward (NCHW in / NCHW out).
# --------------------------------------------------------------------------- #
def bottleneck_forward(x_nchw, params, *, stride=1, groups=1):
    n, cin, h, w = x_nchw.shape
    wa, ba = _fold_conv_bn(params['a']['w'], params['a']['bn'])
    wb, bb = _fold_conv_bn(params['b']['w'], params['b']['bn'])
    wc, bc = _fold_conv_bn(params['c']['w'], params['c']['bn'])
    w_b, w_out = wa.shape[0], wc.shape[0]
    cbp, coutp = _round_up(w_b, LANE), _round_up(w_out, LANE)

    wa2, ba2 = _pack_1x1(wa, ba, cin, cbp)
    wb2, bb2 = _pack_3x3_grouped(wb, bb, groups, cbp, cbp)
    wc2, bc2 = _pack_1x1(wc, bc, cbp, coutp)

    hp = h + 2
    wpp = _round_up(w + 2, SUBLANE)            # keep in-kernel reshapes sublane-aligned
    ho = (h - 1) // stride + 1
    wo = (w - 1) // stride + 1

    x = jnp.transpose(x_nchw, (0, 2, 3, 1))                       # NCHW -> NHWC
    x = jnp.pad(x, ((0, 0), (1, 1), (1, wpp - w - 1), (0, 0)))    # conv-b zero padding
    x = x.reshape(n, hp * wpp, cin).astype(jnp.bfloat16)          # contiguous (free) reshape

    rr = jnp.arange(hp)[:, None]
    cc = jnp.arange(wpp)[None, :]
    mask = ((rr >= 1) & (rr <= h) & (cc >= 1) & (cc <= w))
    mask = mask.astype(jnp.float32).reshape(hp * wpp, 1)

    kernel = functools.partial(_bottleneck_kernel, stride=stride,
                               hp=hp, wpp=wpp, ho=ho, wo=wo)
    out = pl.pallas_call(
        kernel,
        out_shape=jax.ShapeDtypeStruct((n, ho, wo, coutp), jnp.float32),
        grid=(n,),
        in_specs=[
            pl.BlockSpec((1, hp * wpp, cin), lambda i: (i, 0, 0)),   # padded input image
            pl.BlockSpec((hp * wpp, 1), lambda i: (0, 0)),           # interior mask
            pl.BlockSpec((cin, cbp), lambda i: (0, 0)),              # conv-a weight
            pl.BlockSpec((1, cbp), lambda i: (0, 0)),                # conv-a bias
            pl.BlockSpec((9, cbp, cbp), lambda i: (0, 0, 0)),        # conv-b 3x3 taps
            pl.BlockSpec((1, cbp), lambda i: (0, 0)),                # conv-b bias
            pl.BlockSpec((cbp, coutp), lambda i: (0, 0)),            # conv-c weight
            pl.BlockSpec((1, coutp), lambda i: (0, 0)),              # conv-c bias
        ],
        out_specs=pl.BlockSpec((1, ho, wo, coutp), lambda i: (i, 0, 0, 0)),
        scratch_shapes=[pltpu.VMEM((hp, wpp, cbp), jnp.float32)],
        compiler_params=pltpu.CompilerParams(dimension_semantics=("parallel",)),
    )(x, mask, wa2, ba2, wb2, bb2, wc2, bc2)

    out = out[..., :w_out]                                        # drop lane padding
    return jnp.transpose(out, (0, 3, 1, 2))                       # NHWC -> NCHW


# --------------------------------------------------------------------------- #
# Pure-JAX reference (mirrors the kernel's bf16-weight / f32-accumulate numerics).
# --------------------------------------------------------------------------- #
def bottleneck_reference(x_nchw, params, *, stride=1, groups=1):
    wa, ba = _fold_conv_bn(params['a']['w'], params['a']['bn'])
    wb, bb = _fold_conv_bn(params['b']['w'], params['b']['bn'])
    wc, bc = _fold_conv_bn(params['c']['w'], params['c']['bn'])

    def conv(x, w_oihw, s, g, p):
        w_hwio = jnp.transpose(w_oihw.astype(jnp.float32), (2, 3, 1, 0))
        return jax.lax.conv_general_dilated(
            x, w_hwio, (s, s), [(p, p), (p, p)],
            dimension_numbers=('NHWC', 'HWIO', 'NHWC'),
            feature_group_count=g, precision=jax.lax.Precision.HIGHEST)

    x = jnp.transpose(x_nchw, (0, 2, 3, 1)).astype(jnp.bfloat16).astype(jnp.float32)
    a = jnp.maximum(conv(x, wa, 1, 1, 0) + ba, 0.0)
    a = a.astype(jnp.bfloat16).astype(jnp.float32)
    b = jnp.maximum(conv(a, wb, stride, groups, 1) + bb, 0.0)
    b = b.astype(jnp.bfloat16).astype(jnp.float32)
    c = conv(b, wc, 1, 1, 0) + bc
    return jnp.transpose(c, (0, 3, 1, 2))


# --------------------------------------------------------------------------- #
# Parameter builder (eval-mode BN with non-trivial running stats).
# --------------------------------------------------------------------------- #
def make_bottleneck_params(key, w_in, w_out, bottle_ratio=1.0, groups=1):
    w_b = int(round(w_out * bottle_ratio))
    ks = jax.random.split(key, 6)

    def conv_w(k, cout, cin, ksize):
        fan_out = ksize * ksize * cout
        return jax.random.normal(k, (cout, cin, ksize, ksize), jnp.float32) * (2.0 / fan_out) ** 0.5

    def bn(k, c):
        kg, kb, km, kv = jax.random.split(k, 4)
        gamma = 1.0 + 0.1 * jax.random.normal(kg, (c,), jnp.float32)
        beta = 0.1 * jax.random.normal(kb, (c,), jnp.float32)
        mean = 0.1 * jax.random.normal(km, (c,), jnp.float32)
        var = 1.0 + 0.2 * jax.random.uniform(kv, (c,), jnp.float32)
        return gamma, beta, mean, var

    return {
        'a': dict(w=conv_w(ks[0], w_b, w_in, 1), bn=bn(ks[1], w_b)),
        'b': dict(w=conv_w(ks[2], w_b, w_b // groups, 3), bn=bn(ks[3], w_b)),
        'c': dict(w=conv_w(ks[4], w_out, w_b, 1), bn=bn(ks[5], w_out)),
    }


# --------------------------------------------------------------------------- #
if __name__ == "__main__":
    # TODO(synk): SqueezeExcite (use_se=True) branch is not implemented (module default is False).
    key = jax.random.PRNGKey(0)
    kx1, kp1, kx2, kp2 = jax.random.split(key, 4)

    checks = []
    # config 1: strided, grouped bottleneck (w_in=32 -> w_out=64, 16x16 -> 8x8)
    x1 = jax.random.normal(kx1, (2, 32, 16, 16), jnp.float32)
    p1 = make_bottleneck_params(kp1, w_in=32, w_out=64, bottle_ratio=1.0, groups=4)
    checks.append((x1, p1, dict(stride=2, groups=4), (2, 64, 8, 8)))
    # config 2: stride-1 bottleneck (w_in=32 -> w_out=32, 8x8 -> 8x8)
    x2 = jax.random.normal(kx2, (2, 32, 8, 8), jnp.float32)
    p2 = make_bottleneck_params(kp2, w_in=32, w_out=32, bottle_ratio=1.0, groups=2)
    checks.append((x2, p2, dict(stride=1, groups=2), (2, 32, 8, 8)))

    for x, p, kw, want_shape in checks:
        fwd = jax.jit(functools.partial(bottleneck_forward, **kw))
        ref = jax.jit(functools.partial(bottleneck_reference, **kw))
        out = jax.block_until_ready(fwd(x, p))
        exp = jax.block_until_ready(ref(x, p))
        assert tuple(out.shape) == want_shape, (tuple(out.shape), want_shape)
        assert bool(jnp.all(jnp.isfinite(out)))
        err = float(jnp.max(jnp.abs(out - exp)))
        assert err < 5e-2, f"mismatch vs reference: max|diff|={err}"
    print("KERNEL_OK")
</pallas_src>

<mosaic_0001>
module attributes {stable_mosaic.version = 11 : i64} {
  func.func @_bottleneck_kernel(%arg0: i32, %arg1: memref<1x432x32xbf16, #tpu.memory_space<vmem>>, %arg2: memref<432x1xf32, #tpu.memory_space<vmem>>, %arg3: memref<32x128xbf16, #tpu.memory_space<vmem>>, %arg4: memref<1x128xf32, #tpu.memory_space<vmem>>, %arg5: memref<9x128x128xbf16, #tpu.memory_space<vmem>>, %arg6: memref<1x128xf32, #tpu.memory_space<vmem>>, %arg7: memref<128x128xbf16, #tpu.memory_space<vmem>>, %arg8: memref<1x128xf32, #tpu.memory_space<vmem>>, %arg9: memref<1x8x8x128xf32, #tpu.memory_space<vmem>>, %arg10: memref<18x24x128xf32, #tpu.memory_space<vmem>>) attributes {dimension_semantics = [#tpu.dimension_semantics<parallel>], iteration_bounds = array<i64: 2>, scalar_prefetch = 0 : i64, scratch_operands = 1 : i64, tpu.core_type = #tpu.core_type<tc>, window_params = [{transform_indices = @transform_0, window_bounds = array<i64: 1, 432, 32>}, {pipeline_mode = #tpu.pipeline_mode<synchronous>, transform_indices = @transform_1, window_bounds = array<i64: 432, 1>}, {pipeline_mode = #tpu.pipeline_mode<synchronous>, transform_indices = @transform_2, window_bounds = array<i64: 32, 128>}, {pipeline_mode = #tpu.pipeline_mode<synchronous>, transform_indices = @transform_3, window_bounds = array<i64: 1, 128>}, {pipeline_mode = #tpu.pipeline_mode<synchronous>, transform_indices = @transform_4, window_bounds = array<i64: 9, 128, 128>}, {pipeline_mode = #tpu.pipeline_mode<synchronous>, transform_indices = @transform_5, window_bounds = array<i64: 1, 128>}, {pipeline_mode = #tpu.pipeline_mode<synchronous>, transform_indices = @transform_6, window_bounds = array<i64: 128, 128>}, {pipeline_mode = #tpu.pipeline_mode<synchronous>, transform_indices = @transform_7, window_bounds = array<i64: 1, 128>}, {transform_indices = @transform_8, window_bounds = array<i64: 1, 8, 8, 128>}]} {
    %c0 = arith.constant 0 : index
    %c0_0 = arith.constant 0 : index
    %c0_1 = arith.constant 0 : index
    %0 = vector.load %arg1[%c0, %c0_0, %c0_1] : memref<1x432x32xbf16, #tpu.memory_space<vmem>>, vector<1x432x32xbf16>
    %1 = vector.shape_cast %0 : vector<1x432x32xbf16> to vector<432x32xbf16>
    %c0_2 = arith.constant 0 : index
    %c0_3 = arith.constant 0 : index
    %2 = vector.load %arg3[%c0_2, %c0_3] : memref<32x128xbf16, #tpu.memory_space<vmem>>, vector<32x128xbf16>
    %cst = arith.constant dense<0.000000e+00> : vector<432x128xf32>
    %3 = tpu.matmul %1, %2, %cst {dimension_numbers = #tpu.dot_dimension_numbers<[1], [0], [0], [1], [0, 0, 1, 1], [], []>} : vector<432x32xbf16>, vector<32x128xbf16>, vector<432x128xf32> -> vector<432x128xf32>
    %c0_4 = arith.constant 0 : index
    %c0_5 = arith.constant 0 : index
    %4 = vector.load %arg4[%c0_4, %c0_5] : memref<1x128xf32, #tpu.memory_space<vmem>>, vector<1x128xf32>
    %5 = vector.broadcast %4 : vector<1x128xf32> to vector<432x128xf32>
    %6 = arith.addf %3, %5 : vector<432x128xf32>
    %cst_6 = arith.constant 0.000000e+00 : f32
    %7 = vector.broadcast %cst_6 : f32 to vector<432x128xf32>
    %8 = arith.maximumf %6, %7 : vector<432x128xf32>
    %c0_7 = arith.constant 0 : index
    %c0_8 = arith.constant 0 : index
    %9 = vector.load %arg2[%c0_7, %c0_8] : memref<432x1xf32, #tpu.memory_space<vmem>>, vector<432x1xf32>
    %10 = vector.broadcast %9 : vector<432x1xf32> to vector<432x128xf32>
    %11 = arith.mulf %8, %10 : vector<432x128xf32>
    %12 = vector.shape_cast %11 : vector<432x128xf32> to vector<18x24x128xf32>
    %c0_9 = arith.constant 0 : index
    %c0_10 = arith.constant 0 : index
    %c0_11 = arith.constant 0 : index
    %13 = vector.load %arg10[%c0_9, %c0_10, %c0_11] : memref<18x24x128xf32, #tpu.memory_space<vmem>>, vector<18x24x128xf32>
    tpu.vector_store %arg10[%c0_9, %c0_10, %c0_11], %12 {strides = array<i32>} : memref<18x24x128xf32, #tpu.memory_space<vmem>>, vector<18x24x128xf32>,
    %cst_12 = arith.constant 0.000000e+00 : f32
    %14 = vector.broadcast %cst_12 : f32 to vector<64x128xf32>
    %c0_13 = arith.constant 0 : index
    %c0_14 = arith.constant 0 : index
    %c0_15 = arith.constant 0 : index
    %15 = tpu.strided_load %arg10[%c0_13, %c0_14, %c0_15] {strides = array<i32: 2, 2, 1>} : memref<18x24x128xf32, #tpu.memory_space<vmem>>, vector<8x8x128xf32>
    %16 = vector.shape_cast %15 : vector<8x8x128xf32> to vector<64x128xf32>
    %17 = arith.truncf %16 : vector<64x128xf32> to vector<64x128xbf16>
    %c0_16 = arith.constant 0 : index
    %c0_17 = arith.constant 0 : index
    %c0_18 = arith.constant 0 : index
    %18 = vector.load %arg5[%c0_16, %c0_17, %c0_18] : memref<9x128x128xbf16, #tpu.memory_space<vmem>>, vector<1x128x128xbf16>
    %19 = vector.shape_cast %18 : vector<1x128x128xbf16> to vector<128x128xbf16>
    %cst_19 = arith.constant dense<0.000000e+00> : vector<64x128xf32>
    %20 = tpu.matmul %17, %19, %cst_19 {dimension_numbers = #tpu.dot_dimension_numbers<[1], [0], [0], [1], [0, 0, 1, 1], [], []>} : vector<64x128xbf16>, vector<128x128xbf16>, vector<64x128xf32> -> vector<64x128xf32>
    %21 = arith.addf %14, %20 : vector<64x128xf32>
    %c0_20 = arith.constant 0 : index
    %c1 = arith.constant 1 : index
    %c0_21 = arith.constant 0 : index
    %22 = tpu.strided_load %arg10[%c0_20, %c1, %c0_21] {strides = array<i32: 2, 2, 1>} : memref<18x24x128xf32, #tpu.memory_space<vmem>>, vector<8x8x128xf32>
    %23 = vector.shape_cast %22 : vector<8x8x128xf32> to vector<64x128xf32>
    %24 = arith.truncf %23 : vector<64x128xf32> to vector<64x128xbf16>
    %c1_22 = arith.constant 1 : index
    %c0_23 = arith.constant 0 : index
    %c0_24 = arith.constant 0 : index
    %25 = vector.load %arg5[%c1_22, %c0_23, %c0_24] : memref<9x128x128xbf16, #tpu.memory_space<vmem>>, vector<1x128x128xbf16>
    %26 = vector.shape_cast %25 : vector<1x128x128xbf16> to vector<128x128xbf16>
    %cst_25 = arith.constant dense<0.000000e+00> : vector<64x128xf32>
    %27 = tpu.matmul %24, %26, %cst_25 {dimension_numbers = #tpu.dot_dimension_numbers<[1], [0], [0], [1], [0, 0, 1, 1], [], []>} : vector<64x128xbf16>, vector<128x128xbf16>, vector<64x128xf32> -> vector<64x128xf32>
    %28 = arith.addf %21, %27 : vector<64x128xf32>
    %c0_26 = arith.constant 0 : index
    %c2 = arith.constant 2 : index
    %c0_27 = arith.constant 0 : index
    %29 = tpu.strided_load %arg10[%c0_26, %c2, %c0_27] {strides = array<i32: 2, 2, 1>} : memref<18x24x128xf32, #tpu.memory_space<vmem>>, vector<8x8x128xf32>
    %30 = vector.shape_cast %29 : vector<8x8x128xf32> to vector<64x128xf32>
    %31 = arith.truncf %30 : vector<64x128xf32> to vector<64x128xbf16>
    %c2_28 = arith.constant 2 : index
    %c0_29 = arith.constant 0 : index
    %c0_30 = arith.constant 0 : index
    %32 = vector.load %arg5[%c2_28, %c0_29, %c0_30] : memref<9x128x128xbf16, #tpu.memory_space<vmem>>, vector<1x128x128xbf16>
    %33 = vector.shape_cast %32 : vector<1x128x128xbf16> to vector<128x128xbf16>
    %cst_31 = arith.constant dense<0.000000e+00> : vector<64x128xf32>
    %34 = tpu.matmul %31, %33, %cst_31 {dimension_numbers = #tpu.dot_dimension_numbers<[1], [0], [0], [1], [0, 0, 1, 1], [], []>} : vector<64x128xbf16>, vector<128x128xbf16>, vector<64x128xf32> -> vector<64x128xf32>
    %35 = arith.addf %28, %34 : vector<64x128xf32>
    %c1_32 = arith.constant 1 : index
    %c0_33 = arith.constant 0 : index
    %c0_34 = arith.constant 0 : index
    %36 = tpu.strided_load %arg10[%c1_32, %c0_33, %c0_34] {strides = array<i32: 2, 2, 1>} : memref<18x24x128xf32, #tpu.memory_space<vmem>>, vector<8x8x128xf32>
    %37 = vector.shape_cast %36 : vector<8x8x128xf32> to vector<64x128xf32>
    %38 = arith.truncf %37 : vector<64x128xf32> to vector<64x128xbf16>
    %c3 = arith.constant 3 : index
    %c0_35 = arith.constant 0 : index
    %c0_36 = arith.constant 0 : index
    %39 = vector.load %arg5[%c3, %c0_35, %c0_36] : memref<9x128x128xbf16, #tpu.memory_space<vmem>>, vector<1x128x128xbf16>
    %40 = vector.shape_cast %39 : vector<1x128x128xbf16> to vector<128x128xbf16>
    %cst_37 = arith.constant dense<0.000000e+00> : vector<64x128xf32>
    %41 = tpu.matmul %38, %40, %cst_37 {dimension_numbers = #tpu.dot_dimension_numbers<[1], [0], [0], [1], [0, 0, 1, 1], [], []>} : vector<64x128xbf16>, vector<128x128xbf16>, vector<64x128xf32> -> vector<64x128xf32>
    %42 = arith.addf %35, %41 : vector<64x128xf32>
    %c1_38 = arith.constant 1 : index
    %c1_39 = arith.constant 1 : index
    %c0_40 = arith.constant 0 : index
    %43 = tpu.strided_load %arg10[%c1_38, %c1_39, %c0_40] {strides = array<i32: 2, 2, 1>} : memref<18x24x128xf32, #tpu.memory_space<vmem>>, vector<8x8x128xf32>
    %44 = vector.shape_cast %43 : vector<8x8x128xf32> to vector<64x128xf32>
    %45 = arith.truncf %44 : vector<64x128xf32> to vector<64x128xbf16>
    %c4 = arith.constant 4 : index
    %c0_41 = arith.constant 0 : index
    %c0_42 = arith.constant 0 : index
    %46 = vector.load %arg5[%c4, %c0_41, %c0_42] : memref<9x128x128xbf16, #tpu.memory_space<vmem>>, vector<1x128x128xbf16>
    %47 = vector.shape_cast %46 : vector<1x128x128xbf16> to vector<128x128xbf16>
    %cst_43 = arith.constant dense<0.000000e+00> : vector<64x128xf32>
    %48 = tpu.matmul %45, %47, %cst_43 {dimension_numbers = #tpu.dot_dimension_numbers<[1], [0], [0], [1], [0, 0, 1, 1], [], []>} : vector<64x128xbf16>, vector<128x128xbf16>, vector<64x128xf32> -> vector<64x128xf32>
    %49 = arith.addf %42, %48 : vector<64x128xf32>
    %c1_44 = arith.constant 1 : index
    %c2_45 = arith.constant 2 : index
    %c0_46 = arith.constant 0 : index
    %50 = tpu.strided_load %arg10[%c1_44, %c2_45, %c0_46] {strides = array<i32: 2, 2, 1>} : memref<18x24x128xf32, #tpu.memory_space<vmem>>, vector<8x8x128xf32>
    %51 = vector.shape_cast %50 : vector<8x8x128xf32> to vector<64x128xf32>
    %52 = arith.truncf %51 : vector<64x128xf32> to vector<64x128xbf16>
    %c5 = arith.constant 5 : index
    %c0_47 = arith.constant 0 : index
    %c0_48 = arith.constant 0 : index
    %53 = vector.load %arg5[%c5, %c0_47, %c0_48] : memref<9x128x128xbf16, #tpu.memory_space<vmem>>, vector<1x128x128xbf16>
    %54 = vector.shape_cast %53 : vector<1x128x128xbf16> to vector<128x128xbf16>
    %cst_49 = arith.constant dense<0.000000e+00> : vector<64x128xf32>
    %55 = tpu.matmul %52, %54, %cst_49 {dimension_numbers = #tpu.dot_dimension_numbers<[1], [0], [0], [1], [0, 0, 1, 1], [], []>} : vector<64x128xbf16>, vector<128x128xbf16>, vector<64x128xf32> -> vector<64x128xf32>
    %56 = arith.addf %49, %55 : vector<64x128xf32>
    %c2_50 = arith.constant 2 : index
    %c0_51 = arith.constant 0 : index
    %c0_52 = arith.constant 0 : index
    %57 = tpu.strided_load %arg10[%c2_50, %c0_51, %c0_52] {strides = array<i32: 2, 2, 1>} : memref<18x24x128xf32, #tpu.memory_space<vmem>>, vector<8x8x128xf32>
    %58 = vector.shape_cast %57 : vector<8x8x128xf32> to vector<64x128xf32>
    %59 = arith.truncf %58 : vector<64x128xf32> to vector<64x128xbf16>
    %c6 = arith.constant 6 : index
    %c0_53 = arith.constant 0 : index
    %c0_54 = arith.constant 0 : index
    %60 = vector.load %arg5[%c6, %c0_53, %c0_54] : memref<9x128x128xbf16, #tpu.memory_space<vmem>>, vector<1x128x128xbf16>
    %61 = vector.shape_cast %60 : vector<1x128x128xbf16> to vector<128x128xbf16>
    %cst_55 = arith.constant dense<0.000000e+00> : vector<64x128xf32>
    %62 = tpu.matmul %59, %61, %cst_55 {dimension_numbers = #tpu.dot_dimension_numbers<[1], [0], [0], [1], [0, 0, 1, 1], [], []>} : vector<64x128xbf16>, vector<128x128xbf16>, vector<64x128xf32> -> vector<64x128xf32>
    %63 = arith.addf %56, %62 : vector<64x128xf32>
    %c2_56 = arith.constant 2 : index
    %c1_57 = arith.constant 1 : index
    %c0_58 = arith.constant 0 : index
    %64 = tpu.strided_load %arg10[%c2_56, %c1_57, %c0_58] {strides = array<i32: 2, 2, 1>} : memref<18x24x128xf32, #tpu.memory_space<vmem>>, vector<8x8x128xf32>
    %65 = vector.shape_cast %64 : vector<8x8x128xf32> to vector<64x128xf32>
    %66 = arith.truncf %65 : vector<64x128xf32> to vector<64x128xbf16>
    %c7 = arith.constant 7 : index
    %c0_59 = arith.constant 0 : index
    %c0_60 = arith.constant 0 : index
    %67 = vector.load %arg5[%c7, %c0_59, %c0_60] : memref<9x128x128xbf16, #tpu.memory_space<vmem>>, vector<1x128x128xbf16>
    %68 = vector.shape_cast %67 : vector<1x128x128xbf16> to vector<128x128xbf16>
    %cst_61 = arith.constant dense<0.000000e+00> : vector<64x128xf32>
    %69 = tpu.matmul %66, %68, %cst_61 {dimension_numbers = #tpu.dot_dimension_numbers<[1], [0], [0], [1], [0, 0, 1, 1], [], []>} : vector<64x128xbf16>, vector<128x128xbf16>, vector<64x128xf32> -> vector<64x128xf32>
    %70 = arith.addf %63, %69 : vector<64x128xf32>
    %c2_62 = arith.constant 2 : index
    %c2_63 = arith.constant 2 : index
    %c0_64 = arith.constant 0 : index
    %71 = tpu.strided_load %arg10[%c2_62, %c2_63, %c0_64] {strides = array<i32: 2, 2, 1>} : memref<18x24x128xf32, #tpu.memory_space<vmem>>, vector<8x8x128xf32>
    %72 = vector.shape_cast %71 : vector<8x8x128xf32> to vector<64x128xf32>
    %73 = arith.truncf %72 : vector<64x128xf32> to vector<64x128xbf16>
    %c8 = arith.constant 8 : index
    %c0_65 = arith.constant 0 : index
    %c0_66 = arith.constant 0 : index
    %74 = vector.load %arg5[%c8, %c0_65, %c0_66] : memref<9x128x128xbf16, #tpu.memory_space<vmem>>, vector<1x128x128xbf16>
    %75 = vector.shape_cast %74 : vector<1x128x128xbf16> to vector<128x128xbf16>
    %cst_67 = arith.constant dense<0.000000e+00> : vector<64x128xf32>
    %76 = tpu.matmul %73, %75, %cst_67 {dimension_numbers = #tpu.dot_dimension_numbers<[1], [0], [0], [1], [0, 0, 1, 1], [], []>} : vector<64x128xbf16>, vector<128x128xbf16>, vector<64x128xf32> -> vector<64x128xf32>
    %77 = arith.addf %70, %76 : vector<64x128xf32>
    %c0_68 = arith.constant 0 : index
    %c0_69 = arith.constant 0 : index
    %78 = vector.load %arg6[%c0_68, %c0_69] : memref<1x128xf32, #tpu.memory_space<vmem>>, vector<1x128xf32>
    %79 = vector.broadcast %78 : vector<1x128xf32> to vector<64x128xf32>
    %80 = arith.addf %77, %79 : vector<64x128xf32>
    %cst_70 = arith.constant 0.000000e+00 : f32
    %81 = vector.broadcast %cst_70 : f32 to vector<64x128xf32>
    %82 = arith.maximumf %80, %81 : vector<64x128xf32>
    %83 = arith.truncf %82 : vector<64x128xf32> to vector<64x128xbf16>
    %c0_71 = arith.constant 0 : index
    %c0_72 = arith.constant 0 : index
    %84 = vector.load %arg7[%c0_71, %c0_72] : memref<128x128xbf16, #tpu.memory_space<vmem>>, vector<128x128xbf16>
    %cst_73 = arith.constant dense<0.000000e+00> : vector<64x128xf32>
    %85 = tpu.matmul %83, %84, %cst_73 {dimension_numbers = #tpu.dot_dimension_numbers<[1], [0], [0], [1], [0, 0, 1, 1], [], []>} : vector<64x128xbf16>, vector<128x128xbf16>, vector<64x128xf32> -> vector<64x128xf32>
    %c0_74 = arith.constant 0 : index
    %c0_75 = arith.constant 0 : index
    %86 = vector.load %arg8[%c0_74, %c0_75] : memref<1x128xf32, #tpu.memory_space<vmem>>, vector<1x128xf32>
    %87 = vector.broadcast %86 : vector<1x128xf32> to vector<64x128xf32>
    %88 = arith.addf %85, %87 : vector<64x128xf32>
    %89 = vector.shape_cast %88 : vector<64x128xf32> to vector<8x8x128xf32>
    %c0_76 = arith.constant 0 : index
    %c0_77 = arith.constant 0 : index
    %c0_78 = arith.constant 0 : index
    %c0_79 = arith.constant 0 : index
    %90 = vector.load %arg9[%c0_76, %c0_77, %c0_78, %c0_79] : memref<1x8x8x128xf32, #tpu.memory_space<vmem>>, vector<1x8x8x128xf32>
    %91 = vector.shape_cast %90 : vector<1x8x8x128xf32> to vector<8x8x128xf32>
    %92 = vector.shape_cast %89 : vector<8x8x128xf32> to vector<1x8x8x128xf32>
    tpu.vector_store %arg9[%c0_76, %c0_77, %c0_78, %c0_79], %92 {strides = array<i32>} : memref<1x8x8x128xf32, #tpu.memory_space<vmem>>, vector<1x8x8x128xf32>,
    return
  }
  func.func @transform_0(%arg0: i32) -> (i32, i32, i32) {
    %c0_i32 = arith.constant 0 : i32
    %c0_i32_0 = arith.constant 0 : i32
    %c0_i32_1 = arith.constant 0 : i32
    return %arg0, %c0_i32, %c0_i32_0 : i32, i32, i32
  }
  func.func @transform_1(%arg0: i32) -> (i32, i32) {
    %c0_i32 = arith.constant 0 : i32
    %c0_i32_0 = arith.constant 0 : i32
    %c0_i32_1 = arith.constant 0 : i32
    return %c0_i32, %c0_i32_0 : i32, i32
  }
  func.func @transform_2(%arg0: i32) -> (i32, i32) {
    %c0_i32 = arith.constant 0 : i32
    %c0_i32_0 = arith.constant 0 : i32
    %c0_i32_1 = arith.constant 0 : i32
    return %c0_i32, %c0_i32_0 : i32, i32
  }
  func.func @transform_3(%arg0: i32) -> (i32, i32) {
    %c0_i32 = arith.constant 0 : i32
    %c0_i32_0 = arith.constant 0 : i32
    %c0_i32_1 = arith.constant 0 : i32
    return %c0_i32, %c0_i32_0 : i32, i32
  }
  func.func @transform_4(%arg0: i32) -> (i32, i32, i32) {
    %c0_i32 = arith.constant 0 : i32
    %c0_i32_0 = arith.constant 0 : i32
    %c0_i32_1 = arith.constant 0 : i32
    %c0_i32_2 = arith.constant 0 : i32
    return %c0_i32, %c0_i32_0, %c0_i32_1 : i32, i32, i32
  }
  func.func @transform_5(%arg0: i32) -> (i32, i32) {
    %c0_i32 = arith.constant 0 : i32
    %c0_i32_0 = arith.constant 0 : i32
    %c0_i32_1 = arith.constant 0 : i32
    return %c0_i32, %c0_i32_0 : i32, i32
  }
  func.func @transform_6(%arg0: i32) -> (i32, i32) {
    %c0_i32 = arith.constant 0 : i32
    %c0_i32_0 = arith.constant 0 : i32
    %c0_i32_1 = arith.constant 0 : i32
    return %c0_i32, %c0_i32_0 : i32, i32
  }
  func.func @transform_7(%arg0: i32) -> (i32, i32) {
    %c0_i32 = arith.constant 0 : i32
    %c0_i32_0 = arith.constant 0 : i32
    %c0_i32_1 = arith.constant 0 : i32
    return %c0_i32, %c0_i32_0 : i32, i32
  }
  func.func @transform_8(%arg0: i32) -> (i32, i32, i32, i32) {
    %c0_i32 = arith.constant 0 : i32
    %c0_i32_0 = arith.constant 0 : i32
    %c0_i32_1 = arith.constant 0 : i32
    %c0_i32_2 = arith.constant 0 : i32
    return %arg0, %c0_i32, %c0_i32_0, %c0_i32_1 : i32, i32, i32, i32
  }
}

</mosaic_0001>

<llo_original>
// kernel: bottleneck_forward.1
$region0: #{bottleneck_forward.1}
  #allocation0 [shape = 'u32[]', space=smem, size = 0x4, offset = 0x4, fixed_abs, tag = 'smem constant byte address 0x4 - core index']
  #allocation1 [shape = 'u32[144,128]{1,0:T(1,128)}', space=vmem, size = 0x12000, scoped, tag = 'internal scratch']
  #allocation2 [shape = 'f32[18,24,128]{2,1,0:T(8,128)}', space=vmem, size = 0x36000, scoped, tag = 'scratch operand']
  %s0 = inlined_call_operand.vmem [shape: bf16[2,432,32], index: 0, kind: input, shape index: {}]
  %s1 = inlined_call_operand.vmem [shape: f32[432,1], index: 1, kind: input, shape index: {}]
  %s2 = inlined_call_operand.vmem [shape: bf16[32,128], index: 2, kind: input, shape index: {}]
  %s3 = inlined_call_operand.vmem [shape: f32[1,128], index: 3, kind: input, shape index: {}]
  %s4 = inlined_call_operand.vmem [shape: bf16[9,128,128], index: 4, kind: input, shape index: {}]
  %s5 = inlined_call_operand.vmem [shape: f32[1,128], index: 5, kind: input, shape index: {}]
  %s6 = inlined_call_operand.vmem [shape: bf16[128,128], index: 6, kind: input, shape index: {}]
  %s7 = inlined_call_operand.vmem [shape: f32[1,128], index: 7, kind: input, shape index: {}]
  %s8 = inlined_call_operand.vmem [shape: f32[2,8,8,128], index: 8, kind: output, shape index: {}]
  %s9 = sld [smem:[#allocation0]]
  $region65: #{bottleneck_forward.1} parent=0
    _
  %s11 = ssub.s32 1, %s9
  %s12 = scalar_select 0, %s11, %s9
  loop: start=0, step=1, limit=4
  $region2: #{bottleneck_forward.1} parent=0 // loop_pre_header
    _
  $region3: #{bottleneck_forward.1} parent=0 // loop_header
    %s14 = sphi 0, %s18
    %p15 = scmp.ge.s32.totalorder %s14, 4
    %s24 = sphi 0, %s26
    %s27 = sphi 0, %s24
    %s28 = sphi 0, %s27
    %s44 = sphi 0, %s28
    %s48 = sphi 0, %s48
    %s50 = sphi 0, %s48
    %s51 = sphi 0, %s50
    %s65 = sphi 0, %s51
    %s69 = sphi 0, %s69
    %s71 = sphi 0, %s69
    %s72 = sphi 0, %s71
    %s86 = sphi 0, %s72
    %s90 = sphi 0, %s90
    %s92 = sphi 0, %s90
    %s93 = sphi 0, %s92
    %s107 = sphi 0, %s93
    %s111 = sphi 0, %s111
    %s113 = sphi 0, %s111
    %s114 = sphi 0, %s113
    %s128 = sphi 0, %s114
    %s132 = sphi 0, %s132
    %s134 = sphi 0, %s132
    %s135 = sphi 0, %s134
    %s149 = sphi 0, %s135
    %s153 = sphi 0, %s153
    %s155 = sphi 0, %s153
    %s156 = sphi 0, %s155
    %s170 = sphi 0, %s156
    %s174 = sphi 0, %s174
    %s176 = sphi 0, %s174
    %s177 = sphi 0, %s176
    %s191 = sphi 0, %s177
    %s197 = sphi 0, %s199
    %s200 = sphi 0, %s197
    %s201 = sphi 0, %s200
    %s217 = sphi 0, %s201
  $region4: #{bottleneck_forward.1} parent=0 // loop_header_branch
    %17 = sbr.rel (%p15) target = $region8
  $region5: #{bottleneck_forward.1} parent=0 // loop_body
    %s19 = ssub.s32 %s14, 1
    %s20 = ssub.s32 %s14, 2
    %s21 = sadd.s32 %s14, 1
    %s22 = ssub.s32 %s14, %s21
    %p23 = scmp.eq.s32.totalorder %s22, 0
    %s25 = sadd.s32 %s24, 1
    %s26 = scalar_select %p23, %s24, %s25
    %p29 = pneg %p23
    %p30 = scmp.eq.s32.totalorder %s14, 1
    %p31 = por %p29, %p30
    %p32 = scmp.ne.s32.totalorder %s24, %s27
    %p33 = scmp.eq.s32.totalorder %s14, 0
    %p34 = por %p32, %p33
    %p35 = scmp.ne.s32.totalorder %s24, %s27
    %p36 = scmp.eq.s32.totalorder %s19, 1
    %p37 = por %p35, %p36
    %p38 = scmp.ne.s32.totalorder %s27, %s28
    %p39 = scmp.eq.s32.totalorder %s19, 0
    %p40 = por %p38, %p39
    %p41 = scmp.ne.s32.totalorder %s27, %s28
    %p42 = scmp.eq.s32.totalorder %s20, 1
    %p43 = por %p41, %p42
    %p45 = scmp.ne.s32.totalorder %s28, %s44
    %p46 = scmp.eq.s32.totalorder %s20, 0
    %p47 = por %p45, %p46
    %s49 = sadd.s32 %s48, 1
    %p52 = scmp.eq.s32.totalorder %s14, 1
    %p53 = scmp.ne.s32.totalorder %s48, %s50
    %p54 = scmp.eq.s32.totalorder %s14, 0
    %p55 = por %p53, %p54
    %p56 = scmp.ne.s32.totalorder %s48, %s50
    %p57 = scmp.eq.s32.totalorder %s19, 1
    %p58 = por %p56, %p57
    %p59 = scmp.ne.s32.totalorder %s50, %s51
    %p60 = scmp.eq.s32.totalorder %s19, 0
    %p61 = por %p59, %p60
    %p62 = scmp.ne.s32.totalorder %s50, %s51
    %p63 = scmp.eq.s32.totalorder %s20, 1
    %p64 = por %p62, %p63
    %p66 = scmp.ne.s32.totalorder %s51, %s65
    %p67 = scmp.eq.s32.totalorder %s20, 0
    %p68 = por %p66, %p67
    %s70 = sadd.s32 %s69, 1
    %p73 = scmp.eq.s32.totalorder %s14, 1
    %p74 = scmp.ne.s32.totalorder %s69, %s71
    %p75 = scmp.eq.s32.totalorder %s14, 0
    %p76 = por %p74, %p75
    %p77 = scmp.ne.s32.totalorder %s69, %s71
    %p78 = scmp.eq.s32.totalorder %s19, 1
    %p79 = por %p77, %p78
    %p80 = scmp.ne.s32.totalorder %s71, %s72
    %p81 = scmp.eq.s32.totalorder %s19, 0
    %p82 = por %p80, %p81
    %p83 = scmp.ne.s32.totalorder %s71, %s72
    %p84 = scmp.eq.s32.totalorder %s20, 1
    %p85 = por %p83, %p84
    %p87 = scmp.ne.s32.totalorder %s72, %s86
    %p88 = scmp.eq.s32.totalorder %s20, 0
    %p89 = por %p87, %p88
    %s91 = sadd.s32 %s90, 1
    %p94 = scmp.eq.s32.totalorder %s14, 1
    %p95 = scmp.ne.s32.totalorder %s90, %s92
    %p96 = scmp.eq.s32.totalorder %s14, 0
    %p97 = por %p95, %p96
    %p98 = scmp.ne.s32.totalorder %s90, %s92
    %p99 = scmp.eq.s32.totalorder %s19, 1
    %p100 = por %p98, %p99
    %p101 = scmp.ne.s32.totalorder %s92, %s93
    %p102 = scmp.eq.s32.totalorder %s19, 0
    %p103 = por %p101, %p102
    %p104 = scmp.ne.s32.totalorder %s92, %s93
    %p105 = scmp.eq.s32.totalorder %s20, 1
    %p106 = por %p104, %p105
    %p108 = scmp.ne.s32.totalorder %s93, %s107
    %p109 = scmp.eq.s32.totalorder %s20, 0
    %p110 = por %p108, %p109
    %s112 = sadd.s32 %s111, 1
    %p115 = scmp.eq.s32.totalorder %s14, 1
    %p116 = scmp.ne.s32.totalorder %s111, %s113
    %p117 = scmp.eq.s32.totalorder %s14, 0
    %p118 = por %p116, %p117
    %p119 = scmp.ne.s32.totalorder %s111, %s113
    %p120 = scmp.eq.s32.totalorder %s19, 1
    %p121 = por %p119, %p120
    %p122 = scmp.ne.s32.totalorder %s113, %s114
    %p123 = scmp.eq.s32.totalorder %s19, 0
    %p124 = por %p122, %p123
    %p125 = scmp.ne.s32.totalorder %s113, %s114
    %p126 = scmp.eq.s32.totalorder %s20, 1
    %p127 = por %p125, %p126
    %p129 = scmp.ne.s32.totalorder %s114, %s128
    %p130 = scmp.eq.s32.totalorder %s20, 0
    %p131 = por %p129, %p130
    %s133 = sadd.s32 %s132, 1
    %p136 = scmp.eq.s32.totalorder %s14, 1
    %p137 = scmp.ne.s32.totalorder %s132, %s134
    %p138 = scmp.eq.s32.totalorder %s14, 0
    %p139 = por %p137, %p138
    %p140 = scmp.ne.s32.totalorder %s132, %s134
    %p141 = scmp.eq.s32.totalorder %s19, 1
    %p142 = por %p140, %p141
    %p143 = scmp.ne.s32.totalorder %s134, %s135
    %p144 = scmp.eq.s32.totalorder %s19, 0
    %p145 = por %p143, %p144
    %p146 = scmp.ne.s32.totalorder %s134, %s135
    %p147 = scmp.eq.s32.totalorder %s20, 1
    %p148 = por %p146, %p147
    %p150 = scmp.ne.s32.totalorder %s135, %s149
    %p151 = scmp.eq.s32.totalorder %s20, 0
    %p152 = por %p150, %p151
    %s154 = sadd.s32 %s153, 1
    %p157 = scmp.eq.s32.totalorder %s14, 1
    %p158 = scmp.ne.s32.totalorder %s153, %s155
    %p159 = scmp.eq.s32.totalorder %s14, 0
    %p160 = por %p158, %p159
    %p161 = scmp.ne.s32.totalorder %s153, %s155
    %p162 = scmp.eq.s32.totalorder %s19, 1
    %p163 = por %p161, %p162
    %p164 = scmp.ne.s32.totalorder %s155, %s156
    %p165 = scmp.eq.s32.totalorder %s19, 0
    %p166 = por %p164, %p165
    %p167 = scmp.ne.s32.totalorder %s155, %s156
    %p168 = scmp.eq.s32.totalorder %s20, 1
    %p169 = por %p167, %p168
    %p171 = scmp.ne.s32.totalorder %s156, %s170
    %p172 = scmp.eq.s32.totalorder %s20, 0
    %p173 = por %p171, %p172
    %s175 = sadd.s32 %s174, 1
    %p178 = scmp.eq.s32.totalorder %s14, 1
    %p179 = scmp.ne.s32.totalorder %s174, %s176
    %p180 = scmp.eq.s32.totalorder %s14, 0
    %p181 = por %p179, %p180
    %p182 = scmp.ne.s32.totalorder %s174, %s176
    %p183 = scmp.eq.s32.totalorder %s19, 1
    %p184 = por %p182, %p183
    %p185 = scmp.ne.s32.totalorder %s176, %s177
    %p186 = scmp.eq.s32.totalorder %s19, 0
    %p187 = por %p185, %p186
    %p188 = scmp.ne.s32.totalorder %s176, %s177
    %p189 = scmp.eq.s32.totalorder %s20, 1
    %p190 = por %p188, %p189
    %p192 = scmp.ne.s32.totalorder %s177, %s191
    %p193 = scmp.eq.s32.totalorder %s20, 0
    %p194 = por %p192, %p193
    %s195 = ssub.s32 %s14, %s21
    %p196 = scmp.eq.s32.totalorder %s195, 0
    %s198 = sadd.s32 %s197, 1
    %s199 = scalar_select %p196, %s197, %s198
    %p202 = pneg %p196
    %p203 = scmp.eq.s32.totalorder %s14, 1
    %p204 = por %p202, %p203
    %p205 = scmp.ne.s32.totalorder %s197, %s200
    %p206 = scmp.eq.s32.totalorder %s14, 0
    %p207 = por %p205, %p206
    %p208 = scmp.ne.s32.totalorder %s197, %s200
    %p209 = scmp.eq.s32.totalorder %s19, 1
    %p210 = por %p208, %p209
    %p211 = scmp.ne.s32.totalorder %s200, %s201
    %p212 = scmp.eq.s32.totalorder %s19, 0
    %p213 = por %p211, %p212
    %p214 = scmp.ne.s32.totalorder %s200, %s201
    %p215 = scmp.eq.s32.totalorder %s20, 1
    %p216 = por %p214, %p215
    %p218 = scmp.ne.s32.totalorder %s201, %s217
    %p219 = scmp.eq.s32.totalorder %s20, 0
    %p220 = por %p218, %p219
    %p221 = scmp.le.s32.totalorder 1, %s14
    %p222 = scmp.lt.s32.totalorder %s14, 3
    %p223 = pnand %p221, %p222
    %p224 = pneg %p223
    // Predicated region
    $region9: #{bottleneck_forward.1} parent=5 // pred_check
      _
    $region10: #{bottleneck_forward.1} parent=5 // pred_check_branch
      %226 = sbr.rel (%p223) target = $region12
    $region11: #{bottleneck_forward.1} parent=5 // pred_region
      %s227 = ssub.s32 %s14, 1
      // Predicated region
      $region13: #{bottleneck_forward.1} parent=11 // pred_check
        %p228 = pneg %p61
      $region14: #{bottleneck_forward.1} parent=11 // pred_check_branch
        %230 = sbr.rel (%p228) target = $region16
      $region15: #{bottleneck_forward.1} parent=11 // pred_region
        _
      $region16: #{bottleneck_forward.1} parent=11 // pred_fallthru
        _
      // Predicated region
      $region17: #{bottleneck_forward.1} parent=11 // pred_check
        %p231 = pneg %p82
      $region18: #{bottleneck_forward.1} parent=11 // pred_check_branch
        %233 = sbr.rel (%p231) target = $region20
      $region19: #{bottleneck_forward.1} parent=11 // pred_region
        _
      $region20: #{bottleneck_forward.1} parent=11 // pred_fallthru
        _
      // Predicated region
      $region21: #{bottleneck_forward.1} parent=11 // pred_check
        %p234 = pneg %p103
      $region22: #{bottleneck_forward.1} parent=11 // pred_check_branch
        %236 = sbr.rel (%p234) target = $region24
      $region23: #{bottleneck_forward.1} parent=11 // pred_region
        _
      $region24: #{bottleneck_forward.1} parent=11 // pred_fallthru
        _
      // Predicated region
      $region25: #{bottleneck_forward.1} parent=11 // pred_check
        %p237 = pneg %p124
      $region26: #{bottleneck_forward.1} parent=11 // pred_check_branch
        %239 = sbr.rel (%p237) target = $region28
      $region27: #{bottleneck_forward.1} parent=11 // pred_region
        _
      $region28: #{bottleneck_forward.1} parent=11 // pred_fallthru
        _
      // Predicated region
      $region29: #{bottleneck_forward.1} parent=11 // pred_check
        %p240 = pneg %p145
      $region30: #{bottleneck_forward.1} parent=11 // pred_check_branch
        %242 = sbr.rel (%p240) target = $region32
      $region31: #{bottleneck_forward.1} parent=11 // pred_region
        _
      $region32: #{bottleneck_forward.1} parent=11 // pred_fallthru
        _
      // Predicated region
      $region33: #{bottleneck_forward.1} parent=11 // pred_check
        %p243 = pneg %p166
      $region34: #{bottleneck_forward.1} parent=11 // pred_check_branch
        %245 = sbr.rel (%p243) target = $region36
      $region35: #{bottleneck_forward.1} parent=11 // pred_region
        _
      $region36: #{bottleneck_forward.1} parent=11 // pred_fallthru
        _
      // Predicated region
      $region37: #{bottleneck_forward.1} parent=11 // pred_check
        %p246 = pneg %p187
      $region38: #{bottleneck_forward.1} parent=11 // pred_check_branch
        %248 = sbr.rel (%p246) target = $region40
      $region39: #{bottleneck_forward.1} parent=11 // pred_region
        _
      $region40: #{bottleneck_forward.1} parent=11 // pred_fallthru
        _
    $region12: #{bottleneck_forward.1} parent=5 // pred_fallthru
      _
    %p249 = scmp.lt.s32.totalorder %s14, 2
    // Predicated region
    $region41: #{bottleneck_forward.1} parent=5 // pred_check
      %p250 = pneg %p249
    $region42: #{bottleneck_forward.1} parent=5 // pred_check_branch
      %252 = sbr.rel (%p250) target = $region44
    $region43: #{bottleneck_forward.1} parent=5 // pred_region
      // Predicated region
      $region45: #{bottleneck_forward.1} parent=43 // pred_check
        %p253 = pneg %p34
      $region46: #{bottleneck_forward.1} parent=43 // pred_check_branch
        %255 = sbr.rel (%p253) target = $region48
      $region47: #{bottleneck_forward.1} parent=43 // pred_region
        %p256 = scmp.lt.s32.totalorder %s14, 1
        %s257 = scalar_select %p256, %s14, 1
        %s258 = smul.addr %s257, 54
        %s259 = smul.addr %s258, 4
        %s260 = scalar_lea.vmem %s0, %s259
      $region48: #{bottleneck_forward.1} parent=43 // pred_fallthru
        _
    $region44: #{bottleneck_forward.1} parent=5 // pred_fallthru
      _
    %p261 = scmp.le.s32.totalorder 1, %s14
    %p262 = scmp.lt.s32.totalorder %s14, 3
    %p263 = pnand %p261, %p262
    %p264 = pneg %p263
    // Predicated region
    $region49: #{bottleneck_forward.1} parent=5 // pred_check
      _
    $region50: #{bottleneck_forward.1} parent=5 // pred_check_branch
      %266 = sbr.rel (%p263) target = $region52
    $region51: #{bottleneck_forward.1} parent=5 // pred_region
      %s267 = ssub.s32 %s14, 1
      %p268 = scmp.lt.s32.totalorder %s19, 1
      %s269 = scalar_select %p268, %s19, 1
      %s270 = smul.addr %s269, 54
      %s271 = smul.addr %s270, 4
      %s272 = scalar_lea.vmem %s0, %s271
      %p273 = pneg %p40
      %p274 = pneg %p37
      %p275 = pneg %p61
      %p276 = pneg %p58
      %p277 = pneg %p82
      %p278 = pneg %p79
      %p279 = pneg %p103
      %p280 = pneg %p100
      %p281 = pneg %p124
      %p282 = pneg %p121
      %p283 = pneg %p145
      %p284 = pneg %p142
      %p285 = pneg %p166
      %p286 = pneg %p163
      %p287 = pneg %p187
      %p288 = pneg %p184
      %p289 = pneg %p213
      %p290 = pneg %p210
      %p291 = scmp.lt.s32.totalorder %s19, 1
      %s292 = scalar_select %p291, %s19, 1
      %s293 = smul.addr %s292, 8
      %s294 = smul.addr %s293, 8
      %s295 = scalar_lea.vmem %s8, %s294
      %p296 = scmp.lt.s32.totalorder %s19, 1
      %s297 = scalar_select %p296, %s19, 1
      %s298 = smul.addr %s297, 54
      %s299 = smul.addr %s298, 4
      %s300 = scalar_lea.vmem %s0, %s299
      %p301 = scmp.lt.s32.totalorder %s19, 1
      %s302 = scalar_select %p301, %s19, 1
      %s303 = smul.addr %s302, 8
      %s304 = smul.addr %s303, 8
      %s305 = scalar_lea.vmem %s8, %s304
      %v307 = vld [vmem:[%s300] sm:$0xf]
      %v308 = vld [vmem:[%s300 + $0x4] sm:$0xf]
      %v309 = vld [vmem:[%s300 + $0x8] sm:$0xf]
      %v310 = vld [vmem:[%s300 + $0xc] sm:$0xf]
      %v311 = vld [vmem:[%s300 + $0x10] sm:$0xf]
      %v312 = vld [vmem:[%s300 + $0x14] sm:$0xf]
      %v313 = vld [vmem:[%s300 + $0x18] sm:$0xf]
      %v314 = vld [vmem:[%s300 + $0x1c] sm:$0xf]
      %v315 = vld [vmem:[%s300 + $0x20] sm:$0xf]
      %v316 = vld [vmem:[%s300 + $0x24] sm:$0xf]
      %v317 = vld [vmem:[%s300 + $0x28] sm:$0xf]
      %v318 = vld [vmem:[%s300 + $0x2c] sm:$0xf]
      %v319 = vld [vmem:[%s300 + $0x30] sm:$0xf]
      %v320 = vld [vmem:[%s300 + $0x34] sm:$0xf]
      %v321 = vld [vmem:[%s300 + $0x38] sm:$0xf]
      %v322 = vld [vmem:[%s300 + $0x3c] sm:$0xf]
      %v323 = vld [vmem:[%s300 + $0x40] sm:$0xf]
      %v324 = vld [vmem:[%s300 + $0x44] sm:$0xf]
      %v325 = vld [vmem:[%s300 + $0x48] sm:$0xf]
      %v326 = vld [vmem:[%s300 + $0x4c] sm:$0xf]
      %v327 = vld [vmem:[%s300 + $0x50] sm:$0xf]
      %v328 = vld [vmem:[%s300 + $0x54] sm:$0xf]
      %v329 = vld [vmem:[%s300 + $0x58] sm:$0xf]
      %v330 = vld [vmem:[%s300 + $0x5c] sm:$0xf]
      %v331 = vld [vmem:[%s300 + $0x60] sm:$0xf]
      %v332 = vld [vmem:[%s300 + $0x64] sm:$0xf]
      %v333 = vld [vmem:[%s300 + $0x68] sm:$0xf]
      %v334 = vld [vmem:[%s300 + $0x6c] sm:$0xf]
      %v335 = vld [vmem:[%s300 + $0x70] sm:$0xf]
      %v336 = vld [vmem:[%s300 + $0x74] sm:$0xf]
      %v337 = vld [vmem:[%s300 + $0x78] sm:$0xf]
      %v338 = vld [vmem:[%s300 + $0x7c] sm:$0xf]
      %v339 = vld [vmem:[%s300 + $0x80] sm:$0xf]
      %v340 = vld [vmem:[%s300 + $0x84] sm:$0xf]
      %v341 = vld [vmem:[%s300 + $0x88] sm:$0xf]
      %v342 = vld [vmem:[%s300 + $0x8c] sm:$0xf]
      %v343 = vld [vmem:[%s300 + $0x90] sm:$0xf]
      %v344 = vld [vmem:[%s300 + $0x94] sm:$0xf]
      %v345 = vld [vmem:[%s300 + $0x98] sm:$0xf]
      %v346 = vld [vmem:[%s300 + $0x9c] sm:$0xf]
      %v347 = vld [vmem:[%s300 + $0xa0] sm:$0xf]
      %v348 = vld [vmem:[%s300 + $0xa4] sm:$0xf]
      %v349 = vld [vmem:[%s300 + $0xa8] sm:$0xf]
      %v350 = vld [vmem:[%s300 + $0xac] sm:$0xf]
      %v351 = vld [vmem:[%s300 + $0xb0] sm:$0xf]
      %v352 = vld [vmem:[%s300 + $0xb4] sm:$0xf]
      %v353 = vld [vmem:[%s300 + $0xb8] sm:$0xf]
      %v354 = vld [vmem:[%s300 + $0xbc] sm:$0xf]
      %v355 = vld [vmem:[%s300 + $0xc0] sm:$0xf]
      %v356 = vld [vmem:[%s300 + $0xc4] sm:$0xf]
      %v357 = vld [vmem:[%s300 + $0xc8] sm:$0xf]
      %v358 = vld [vmem:[%s300 + $0xcc] sm:$0xf]
      %v359 = vld [vmem:[%s300 + $0xd0] sm:$0xf]
      %v360 = vld [vmem:[%s300 + $0xd4] sm:$0xf]
      %v361 = vld [vmem:[%s2] sm:$0xf]
      %v362 = vld [vmem:[%s2 + $0x4] sm:$0xf]
      %v363 = vld [vmem:[%s2 + $0x8] sm:$0xf]
      %v364 = vld [vmem:[%s2 + $0xc] sm:$0xf]
      %v365 = vld [vmem:[%s3] sm:$0x1]
      %v367 = vlaneseq
      %v368 = vshrl.u32 %v367, 7
      %v369 = vsub.s32 0, %v368
      %v370 = vrot.slane %v365, %v369
      %v426 = vunpack.c.l.b16 %v307
      %v427 = vunpack.c.l.b16 %v308
      %v428 = vunpack.c.l.b16 %v309
      %v429 = vunpack.c.l.b16 %v310
      %v430 = vunpack.c.l.b16 %v311
      %v431 = vunpack.c.l.b16 %v312
      %v432 = vunpack.c.l.b16 %v313
      %v433 = vunpack.c.l.b16 %v314
      %v434 = vunpack.c.l.b16 %v315
      %v435 = vunpack.c.l.b16 %v316
      %v436 = vunpack.c.l.b16 %v317
      %v437 = vunpack.c.l.b16 %v318
      %v438 = vunpack.c.l.b16 %v319
      %v439 = vunpack.c.l.b16 %v320
      %v440 = vunpack.c.l.b16 %v321
      %v441 = vunpack.c.l.b16 %v322
      %v442 = vunpack.c.l.b16 %v323
      %v443 = vunpack.c.l.b16 %v324
      %v444 = vunpack.c.l.b16 %v325
      %v445 = vunpack.c.l.b16 %v326
      %v446 = vunpack.c.l.b16 %v327
      %v447 = vunpack.c.l.b16 %v328
      %v448 = vunpack.c.l.b16 %v329
      %v449 = vunpack.c.l.b16 %v330
      %v450 = vunpack.c.l.b16 %v331
      %v451 = vunpack.c.l.b16 %v332
      %v452 = vunpack.c.l.b16 %v333
      %v453 = vunpack.c.l.b16 %v334
      %v454 = vunpack.c.l.b16 %v335
      %v455 = vunpack.c.l.b16 %v336
      %v456 = vunpack.c.l.b16 %v337
      %v457 = vunpack.c.l.b16 %v338
      %v458 = vunpack.c.l.b16 %v339
      %v459 = vunpack.c.l.b16 %v340
      %v460 = vunpack.c.l.b16 %v341
      %v461 = vunpack.c.l.b16 %v342
      %v462 = vunpack.c.l.b16 %v343
      %v463 = vunpack.c.l.b16 %v344
      %v464 = vunpack.c.l.b16 %v345
      %v465 = vunpack.c.l.b16 %v346
      %v466 = vunpack.c.l.b16 %v347
      %v467 = vunpack.c.l.b16 %v348
      %v468 = vunpack.c.l.b16 %v349
      %v469 = vunpack.c.l.b16 %v350
      %v470 = vunpack.c.l.b16 %v351
      %v471 = vunpack.c.l.b16 %v352
      %v472 = vunpack.c.l.b16 %v353
      %v473 = vunpack.c.l.b16 %v354
      %v474 = vunpack.c.l.b16 %v355
      %v475 = vunpack.c.l.b16 %v356
      %v476 = vunpack.c.l.b16 %v357
      %v477 = vunpack.c.l.b16 %v358
      %v478 = vunpack.c.l.b16 %v359
      %v479 = vunpack.c.l.b16 %v360
      %v480 = vpack.c.b16 %v427, %v426
      %v481 = vpack.c.b16 %v429, %v428
      %v482 = vpack.c.b16 %v431, %v430
      %v483 = vpack.c.b16 %v433, %v432
      %v484 = vpack.c.b16 %v435, %v434
      %v485 = vpack.c.b16 %v437, %v436
      %v486 = vpack.c.b16 %v439, %v438
      %v487 = vpack.c.b16 %v441, %v440
      %v488 = vpack.c.b16 %v443, %v442
      %v489 = vpack.c.b16 %v445, %v444
      %v490 = vpack.c.b16 %v447, %v446
      %v491 = vpack.c.b16 %v449, %v448
      %v492 = vpack.c.b16 %v451, %v450
      %v493 = vpack.c.b16 %v453, %v452
      %v494 = vpack.c.b16 %v455, %v454
      %v495 = vpack.c.b16 %v457, %v456
      %v496 = vpack.c.b16 %v459, %v458
      %v497 = vpack.c.b16 %v461, %v460
      %v498 = vpack.c.b16 %v463, %v462
      %v499 = vpack.c.b16 %v465, %v464
      %v500 = vpack.c.b16 %v467, %v466
      %v501 = vpack.c.b16 %v469, %v468
      %v502 = vpack.c.b16 %v471, %v470
      %v503 = vpack.c.b16 %v473, %v472
      %v504 = vpack.c.b16 %v475, %v474
      %v505 = vpack.c.b16 %v477, %v476
      %v506 = vpack.c.b16 %v479, %v478
      %v511 = vunpack.c.l.b16 %v361
      %v512 = vunpack.c.l.b16 %v362
      %v513 = vunpack.c.l.b16 %v363
      %v514 = vunpack.c.l.b16 %v364
      %v515 = vpack.c.b16 %v512, %v511
      %v516 = vpack.c.b16 %v514, %v513
      %vm519 = vcmask 261120
      %v521 = vsel %vm519, %v480, 0
      %v524 = vsel %vm519, %v481, 0
      %v527 = vsel %vm519, %v482, 0
      %v530 = vsel %vm519, %v483, 0
      %v533 = vsel %vm519, %v484, 0
      %v536 = vsel %vm519, %v485, 0
      %v539 = vsel %vm519, %v486, 0
      %v542 = vsel %vm519, %v487, 0
      %v545 = vsel %vm519, %v488, 0
      %v548 = vsel %vm519, %v489, 0
      %v551 = vsel %vm519, %v490, 0
      %v554 = vsel %vm519, %v491, 0
      %v557 = vsel %vm519, %v492, 0
      %v560 = vsel %vm519, %v493, 0
      %v563 = vsel %vm519, %v494, 0
      %v566 = vsel %vm519, %v495, 0
      %v569 = vsel %vm519, %v496, 0
      %v572 = vsel %vm519, %v497, 0
      %v575 = vsel %vm519, %v498, 0
      %v578 = vsel %vm519, %v499, 0
      %v581 = vsel %vm519, %v500, 0
      %v584 = vsel %vm519, %v501, 0
      %v587 = vsel %vm519, %v502, 0
      %v590 = vsel %vm519, %v503, 0
      %v593 = vsel %vm519, %v504, 0
      %v596 = vsel %vm519, %v505, 0
      %v599 = vsel %vm519, %v506, 0
      %601 = vmatprep.subr.bf16.mxu0 0
      %602 = vmatpush1.bf16.msra.mxu0 %v515
      %603 = vmatprep.subr.bf16.mxu0 0
      %604 = vmatpush1.bf16.msra.mxu0 %v516
      %605 = vmatprep.subr.bf16.mxu0 0
      %606 = vmatpush1.bf16.msra.mxu0 0
      %607 = vmatprep.subr.bf16.mxu0 0
      %608 = vmatpush1.bf16.msra.mxu0 0
      %609 = vmatprep.subr.bf16.mxu0 0
      %610 = vmatpush1.bf16.msra.mxu0 0
      %611 = vmatprep.subr.bf16.mxu0 0
      %612 = vmatpush1.bf16.msra.mxu0 0
      %613 = vmatprep.subr.bf16.mxu0 0
      %614 = vmatpush1.bf16.msra.mxu0 0
      %615 = vmatprep.subr.bf16.mxu0 0
      %616 = vmatpush1.bf16.msra.mxu0 0
      %617 = vmatprep.subr.bf16.mxu0 0
      %618 = vmatpush1.bf16.msra.mxu0 0
      %619 = vmatprep.subr.bf16.mxu0 0
      %620 = vmatpush1.bf16.msra.mxu0 0
      %621 = vmatprep.subr.bf16.mxu0 0
      %622 = vmatpush1.bf16.msra.mxu0 0
      %623 = vmatprep.subr.bf16.mxu0 0
      %624 = vmatpush1.bf16.msra.mxu0 0
      %625 = vmatprep.subr.bf16.mxu0 0
      %626 = vmatpush1.bf16.msra.mxu0 0
      %627 = vmatprep.subr.bf16.mxu0 0
      %628 = vmatpush1.bf16.msra.mxu0 0
      %629 = vmatprep.subr.bf16.mxu0 0
      %630 = vmatpush1.bf16.msra.mxu0 0
      %631 = vmatprep.subr.bf16.mxu0 0
      %632 = vmatpush1.bf16.msra.mxu0 0
      %633 = vmatprep.mubr.bf16.mxu0 0
      %634 = vmatmul.mubr.bf16.gmra.mrb[0].mxu0 %v521
      %v635 = vpop.f32.mrb[0].mxu0
      %v636 = vadd.f32 %v370, %v635
      %v637 = vpop.f32.mrb[0].mxu0
      %v638 = vpop.f32.mrb[0].mxu0
      %v639 = vadd.f32 %v370, %v638
      %v640 = vpop.f32.mrb[0].mxu0
      %641 = vmatprep.mubr.bf16.mxu0 0
      %642 = vmatmul.mubr.bf16.gmra.mrb[0].mxu0 %v524
      %v643 = vpop.f32.mrb[0].mxu0
      %v644 = vadd.f32 %v370, %v643
      %v645 = vpop.f32.mrb[0].mxu0
      %v646 = vpop.f32.mrb[0].mxu0
      %v647 = vadd.f32 %v370, %v646
      %v648 = vpop.f32.mrb[0].mxu0
      %649 = vmatprep.mubr.bf16.mxu0 0
      %650 = vmatmul.mubr.bf16.gmra.mrb[0].mxu0 %v527
      %v651 = vpop.f32.mrb[0].mxu0
      %v652 = vadd.f32 %v370, %v651
      %v653 = vpop.f32.mrb[0].mxu0
      %v654 = vpop.f32.mrb[0].mxu0
      %v655 = vadd.f32 %v370, %v654
      %v656 = vpop.f32.mrb[0].mxu0
      %657 = vmatprep.mubr.bf16.mxu0 0
      %658 = vmatmul.mubr.bf16.gmra.mrb[0].mxu0 %v530
      %v659 = vpop.f32.mrb[0].mxu0
      %v660 = vadd.f32 %v370, %v659
      %v661 = vpop.f32.mrb[0].mxu0
      %v662 = vpop.f32.mrb[0].mxu0
      %v663 = vadd.f32 %v370, %v662
      %v664 = vpop.f32.mrb[0].mxu0
      %665 = vmatprep.mubr.bf16.mxu0 0
      %666 = vmatmul.mubr.bf16.gmra.mrb[0].mxu0 %v533
      %v667 = vpop.f32.mrb[0].mxu0
      %v668 = vadd.f32 %v370, %v667
      %v669 = vpop.f32.mrb[0].mxu0
      %v670 = vpop.f32.mrb[0].mxu0
      %v671 = vadd.f32 %v370, %v670
      %v672 = vpop.f32.mrb[0].mxu0
      %673 = vmatprep.mubr.bf16.mxu0 0
      %674 = vmatmul.mubr.bf16.gmra.mrb[0].mxu0 %v536
      %v675 = vpop.f32.mrb[0].mxu0
      %v676 = vadd.f32 %v370, %v675
      %v677 = vpop.f32.mrb[0].mxu0
      %v678 = vpop.f32.mrb[0].mxu0
      %v679 = vadd.f32 %v370, %v678
      %v680 = vpop.f32.mrb[0].mxu0
      %681 = vmatprep.mubr.bf16.mxu0 0
      %682 = vmatmul.mubr.bf16.gmra.mrb[0].mxu0 %v539
      %v683 = vpop.f32.mrb[0].mxu0
      %v684 = vadd.f32 %v370, %v683
      %v685 = vpop.f32.mrb[0].mxu0
      %v686 = vpop.f32.mrb[0].mxu0
      %v687 = vadd.f32 %v370, %v686
      %v688 = vpop.f32.mrb[0].mxu0
      %689 = vmatprep.mubr.bf16.mxu0 0
      %690 = vmatmul.mubr.bf16.gmra.mrb[0].mxu0 %v542
      %v691 = vpop.f32.mrb[0].mxu0
      %v692 = vadd.f32 %v370, %v691
      %v693 = vpop.f32.mrb[0].mxu0
      %v694 = vpop.f32.mrb[0].mxu0
      %v695 = vadd.f32 %v370, %v694
      %v696 = vpop.f32.mrb[0].mxu0
      %697 = vmatprep.mubr.bf16.mxu0 0
      %698 = vmatmul.mubr.bf16.gmra.mrb[0].mxu0 %v545
      %v699 = vpop.f32.mrb[0].mxu0
      %v700 = vadd.f32 %v370, %v699
      %v701 = vpop.f32.mrb[0].mxu0
      %v702 = vpop.f32.mrb[0].mxu0
      %v703 = vadd.f32 %v370, %v702
      %v704 = vpop.f32.mrb[0].mxu0
      %705 = vmatprep.mubr.bf16.mxu0 0
      %706 = vmatmul.mubr.bf16.gmra.mrb[0].mxu0 %v548
      %v707 = vpop.f32.mrb[0].mxu0
      %v708 = vadd.f32 %v370, %v707
      %v709 = vpop.f32.mrb[0].mxu0
      %v710 = vpop.f32.mrb[0].mxu0
      %v711 = vadd.f32 %v370, %v710
      %v712 = vpop.f32.mrb[0].mxu0
      %713 = vmatprep.mubr.bf16.mxu0 0
      %714 = vmatmul.mubr.bf16.gmra.mrb[0].mxu0 %v551
      %v715 = vpop.f32.mrb[0].mxu0
      %v716 = vadd.f32 %v370, %v715
      %v717 = vpop.f32.mrb[0].mxu0
      %v718 = vpop.f32.mrb[0].mxu0
      %v719 = vadd.f32 %v370, %v718
      %v720 = vpop.f32.mrb[0].mxu0
      %721 = vmatprep.mubr.bf16.mxu0 0
      %722 = vmatmul.mubr.bf16.gmra.mrb[0].mxu0 %v554
      %v723 = vpop.f32.mrb[0].mxu0
      %v724 = vadd.f32 %v370, %v723
      %v725 = vpop.f32.mrb[0].mxu0
      %v726 = vpop.f32.mrb[0].mxu0
      %v727 = vadd.f32 %v370, %v726
      %v728 = vpop.f32.mrb[0].mxu0
      %729 = vmatprep.mubr.bf16.mxu0 0
      %730 = vmatmul.mubr.bf16.gmra.mrb[0].mxu0 %v557
      %v731 = vpop.f32.mrb[0].mxu0
      %v732 = vadd.f32 %v370, %v731
      %v733 = vpop.f32.mrb[0].mxu0
      %v734 = vpop.f32.mrb[0].mxu0
      %v735 = vadd.f32 %v370, %v734
      %v736 = vpop.f32.mrb[0].mxu0
      %737 = vmatprep.mubr.bf16.mxu0 0
      %738 = vmatmul.mubr.bf16.gmra.mrb[0].mxu0 %v560
      %v739 = vpop.f32.mrb[0].mxu0
      %v740 = vadd.f32 %v370, %v739
      %v741 = vpop.f32.mrb[0].mxu0
      %v742 = vpop.f32.mrb[0].mxu0
      %v743 = vadd.f32 %v370, %v742
      %v744 = vpop.f32.mrb[0].mxu0
      %745 = vmatprep.mubr.bf16.mxu0 0
      %746 = vmatmul.mubr.bf16.gmra.mrb[0].mxu0 %v563
      %v747 = vpop.f32.mrb[0].mxu0
      %v748 = vadd.f32 %v370, %v747
      %v749 = vpop.f32.mrb[0].mxu0
      %v750 = vpop.f32.mrb[0].mxu0
      %v751 = vadd.f32 %v370, %v750
      %v752 = vpop.f32.mrb[0].mxu0
      %753 = vmatprep.mubr.bf16.mxu0 0
      %754 = vmatmul.mubr.bf16.gmra.mrb[0].mxu0 %v566
      %v755 = vpop.f32.mrb[0].mxu0
      %v756 = vadd.f32 %v370, %v755
      %v757 = vpop.f32.mrb[0].mxu0
      %v758 = vpop.f32.mrb[0].mxu0
      %v759 = vadd.f32 %v370, %v758
      %v760 = vpop.f32.mrb[0].mxu0
      %761 = vmatprep.mubr.bf16.mxu0 0
      %762 = vmatmul.mubr.bf16.gmra.mrb[0].mxu0 %v569
      %v763 = vpop.f32.mrb[0].mxu0
      %v764 = vadd.f32 %v370, %v763
      %v765 = vpop.f32.mrb[0].mxu0
      %v766 = vpop.f32.mrb[0].mxu0
      %v767 = vadd.f32 %v370, %v766
      %v768 = vpop.f32.mrb[0].mxu0
      %769 = vmatprep.mubr.bf16.mxu0 0
      %770 = vmatmul.mubr.bf16.gmra.mrb[0].mxu0 %v572
      %v771 = vpop.f32.mrb[0].mxu0
      %v772 = vadd.f32 %v370, %v771
      %v773 = vpop.f32.mrb[0].mxu0
      %v774 = vpop.f32.mrb[0].mxu0
      %v775 = vadd.f32 %v370, %v774
      %v776 = vpop.f32.mrb[0].mxu0
      %777 = vmatprep.mubr.bf16.mxu0 0
      %778 = vmatmul.mubr.bf16.gmra.mrb[0].mxu0 %v575
      %v779 = vpop.f32.mrb[0].mxu0
      %v780 = vadd.f32 %v370, %v779
      %v781 = vpop.f32.mrb[0].mxu0
      %v782 = vpop.f32.mrb[0].mxu0
      %v783 = vadd.f32 %v370, %v782
      %v784 = vpop.f32.mrb[0].mxu0
      %785 = vmatprep.mubr.bf16.mxu0 0
      %786 = vmatmul.mubr.bf16.gmra.mrb[0].mxu0 %v578
      %v787 = vpop.f32.mrb[0].mxu0
      %v788 = vadd.f32 %v370, %v787
      %v789 = vpop.f32.mrb[0].mxu0
      %v790 = vpop.f32.mrb[0].mxu0
      %v791 = vadd.f32 %v370, %v790
      %v792 = vpop.f32.mrb[0].mxu0
      %793 = vmatprep.mubr.bf16.mxu0 0
      %794 = vmatmul.mubr.bf16.gmra.mrb[0].mxu0 %v581
      %v795 = vpop.f32.mrb[0].mxu0
      %v796 = vadd.f32 %v370, %v795
      %v797 = vpop.f32.mrb[0].mxu0
      %v798 = vpop.f32.mrb[0].mxu0
      %v799 = vadd.f32 %v370, %v798
      %v800 = vpop.f32.mrb[0].mxu0
      %801 = vmatprep.mubr.bf16.mxu0 0
      %802 = vmatmul.mubr.bf16.gmra.mrb[0].mxu0 %v584
      %v803 = vpop.f32.mrb[0].mxu0
      %v804 = vadd.f32 %v370, %v803
      %v805 = vpop.f32.mrb[0].mxu0
      %v806 = vpop.f32.mrb[0].mxu0
      %v807 = vadd.f32 %v370, %v806
      %v808 = vpop.f32.mrb[0].mxu0
      %809 = vmatprep.mubr.bf16.mxu0 0
      %810 = vmatmul.mubr.bf16.gmra.mrb[0].mxu0 %v587
      %v811 = vpop.f32.mrb[0].mxu0
      %v812 = vadd.f32 %v370, %v811
      %v813 = vpop.f32.mrb[0].mxu0
      %v814 = vpop.f32.mrb[0].mxu0
      %v815 = vadd.f32 %v370, %v814
      %v816 = vpop.f32.mrb[0].mxu0
      %817 = vmatprep.mubr.bf16.mxu0 0
      %818 = vmatmul.mubr.bf16.gmra.mrb[0].mxu0 %v590
      %v819 = vpop.f32.mrb[0].mxu0
      %v820 = vadd.f32 %v370, %v819
      %v821 = vpop.f32.mrb[0].mxu0
      %v822 = vpop.f32.mrb[0].mxu0
      %v823 = vadd.f32 %v370, %v822
      %v824 = vpop.f32.mrb[0].mxu0
      %825 = vmatprep.mubr.bf16.mxu0 0
      %826 = vmatmul.mubr.bf16.gmra.mrb[0].mxu0 %v593
      %v827 = vpop.f32.mrb[0].mxu0
      %v828 = vadd.f32 %v370, %v827
      %v829 = vpop.f32.mrb[0].mxu0
      %v830 = vpop.f32.mrb[0].mxu0
      %v831 = vadd.f32 %v370, %v830
      %v832 = vpop.f32.mrb[0].mxu0
      %833 = vmatprep.mubr.bf16.mxu0 0
      %834 = vmatmul.mubr.bf16.gmra.mrb[0].mxu0 %v596
      %v835 = vpop.f32.mrb[0].mxu0
      %v836 = vadd.f32 %v370, %v835
      %v837 = vpop.f32.mrb[0].mxu0
      %v838 = vpop.f32.mrb[0].mxu0
      %v839 = vadd.f32 %v370, %v838
      %v840 = vpop.f32.mrb[0].mxu0
      %841 = vmatprep.mubr.bf16.mxu0 0
      %842 = vmatmul.mubr.bf16.gmra.mrb[0].mxu0 %v599
      %v843 = vpop.f32.mrb[0].mxu0
      %v844 = vadd.f32 %v370, %v843
      %v845 = vpop.f32.mrb[0].mxu0
      %v846 = vpop.f32.mrb[0].mxu0
      %v847 = vadd.f32 %v370, %v846
      %v848 = vpop.f32.mrb[0].mxu0
      %849 = vdwg.mxu0
      %v850 = vmax.f32 %v636, 0.0
      %v851 = vmax.f32 %v639, 0.0
      %v852 = vmax.f32 %v644, 0.0
      %v853 = vmax.f32 %v647, 0.0
      %v854 = vmax.f32 %v652, 0.0
      %v855 = vmax.f32 %v655, 0.0
      %v856 = vmax.f32 %v660, 0.0
      %v857 = vmax.f32 %v663, 0.0
      %v858 = vmax.f32 %v668, 0.0
      %v859 = vmax.f32 %v671, 0.0
      %v860 = vmax.f32 %v676, 0.0
      %v861 = vmax.f32 %v679, 0.0
      %v862 = vmax.f32 %v684, 0.0
      %v863 = vmax.f32 %v687, 0.0
      %v864 = vmax.f32 %v692, 0.0
      %v865 = vmax.f32 %v695, 0.0
      %v866 = vmax.f32 %v700, 0.0
      %v867 = vmax.f32 %v703, 0.0
      %v868 = vmax.f32 %v708, 0.0
      %v869 = vmax.f32 %v711, 0.0
      %v870 = vmax.f32 %v716, 0.0
      %v871 = vmax.f32 %v719, 0.0
      %v872 = vmax.f32 %v724, 0.0
      %v873 = vmax.f32 %v727, 0.0
      %v874 = vmax.f32 %v732, 0.0
      %v875 = vmax.f32 %v735, 0.0
      %v876 = vmax.f32 %v740, 0.0
      %v877 = vmax.f32 %v743, 0.0
      %v878 = vmax.f32 %v748, 0.0
      %v879 = vmax.f32 %v751, 0.0
      %v880 = vmax.f32 %v756, 0.0
      %v881 = vmax.f32 %v759, 0.0
      %v882 = vmax.f32 %v764, 0.0
      %v883 = vmax.f32 %v767, 0.0
      %v884 = vmax.f32 %v772, 0.0
      %v885 = vmax.f32 %v775, 0.0
      %v886 = vmax.f32 %v780, 0.0
      %v887 = vmax.f32 %v783, 0.0
      %v888 = vmax.f32 %v788, 0.0
      %v889 = vmax.f32 %v791, 0.0
      %v890 = vmax.f32 %v796, 0.0
      %v891 = vmax.f32 %v799, 0.0
      %v892 = vmax.f32 %v804, 0.0
      %v893 = vmax.f32 %v807, 0.0
      %v894 = vmax.f32 %v812, 0.0
      %v895 = vmax.f32 %v815, 0.0
      %v896 = vmax.f32 %v820, 0.0
      %v897 = vmax.f32 %v823, 0.0
      %v898 = vmax.f32 %v828, 0.0
      %v899 = vmax.f32 %v831, 0.0
      %v900 = vmax.f32 %v836, 0.0
      %v901 = vmax.f32 %v839, 0.0
      %v902 = vmax.f32 %v844, 0.0
      %v903 = vmax.f32 %v847, 0.0
      %v904 = vld [vmem:[%s1] sm:$0xff]
      %v905 = vld [vmem:[%s1 + $0x8] sm:$0xff]
      %v906 = vld [vmem:[%s1 + $0x10] sm:$0xff]
      %v907 = vld [vmem:[%s1 + $0x18] sm:$0xff]
      %v908 = vld [vmem:[%s1 + $0x20] sm:$0xff]
      %v909 = vld [vmem:[%s1 + $0x28] sm:$0xff]
      %v910 = vld [vmem:[%s1 + $0x30] sm:$0xff]
      %v911 = vld [vmem:[%s1 + $0x38] sm:$0xff]
      %v912 = vld [vmem:[%s1 + $0x40] sm:$0xff]
      %v913 = vld [vmem:[%s1 + $0x48] sm:$0xff]
      %v914 = vld [vmem:[%s1 + $0x50] sm:$0xff]
      %v915 = vld [vmem:[%s1 + $0x58] sm:$0xff]
      %v916 = vld [vmem:[%s1 + $0x60] sm:$0xff]
      %v917 = vld [vmem:[%s1 + $0x68] sm:$0xff]
      %v918 = vld [vmem:[%s1 + $0x70] sm:$0xff]
      %v919 = vld [vmem:[%s1 + $0x78] sm:$0xff]
      %v920 = vld [vmem:[%s1 + $0x80] sm:$0xff]
      %v921 = vld [vmem:[%s1 + $0x88] sm:$0xff]
      %v922 = vld [vmem:[%s1 + $0x90] sm:$0xff]
      %v923 = vld [vmem:[%s1 + $0x98] sm:$0xff]
      %v924 = vld [vmem:[%s1 + $0xa0] sm:$0xff]
      %v925 = vld [vmem:[%s1 + $0xa8] sm:$0xff]
      %v926 = vld [vmem:[%s1 + $0xb0] sm:$0xff]
      %v927 = vld [vmem:[%s1 + $0xb8] sm:$0xff]
      %v928 = vld [vmem:[%s1 + $0xc0] sm:$0xff]
      %v929 = vld [vmem:[%s1 + $0xc8] sm:$0xff]
      %v930 = vld [vmem:[%s1 + $0xd0] sm:$0xff]
      %v931 = vld [vmem:[%s1 + $0xd8] sm:$0xff]
      %v932 = vld [vmem:[%s1 + $0xe0] sm:$0xff]
      %v933 = vld [vmem:[%s1 + $0xe8] sm:$0xff]
      %v934 = vld [vmem:[%s1 + $0xf0] sm:$0xff]
      %v935 = vld [vmem:[%s1 + $0xf8] sm:$0xff]
      %v936 = vld [vmem:[%s1 + $0x100] sm:$0xff]
      %v937 = vld [vmem:[%s1 + $0x108] sm:$0xff]
      %v938 = vld [vmem:[%s1 + $0x110] sm:$0xff]
      %v939 = vld [vmem:[%s1 + $0x118] sm:$0xff]
      %v940 = vld [vmem:[%s1 + $0x120] sm:$0xff]
      %v941 = vld [vmem:[%s1 + $0x128] sm:$0xff]
      %v942 = vld [vmem:[%s1 + $0x130] sm:$0xff]
      %v943 = vld [vmem:[%s1 + $0x138] sm:$0xff]
      %v944 = vld [vmem:[%s1 + $0x140] sm:$0xff]
      %v945 = vld [vmem:[%s1 + $0x148] sm:$0xff]
      %v946 = vld [vmem:[%s1 + $0x150] sm:$0xff]
      %v947 = vld [vmem:[%s1 + $0x158] sm:$0xff]
      %v948 = vld [vmem:[%s1 + $0x160] sm:$0xff]
      %v949 = vld [vmem:[%s1 + $0x168] sm:$0xff]
      %v950 = vld [vmem:[%s1 + $0x170] sm:$0xff]
      %v951 = vld [vmem:[%s1 + $0x178] sm:$0xff]
      %v952 = vld [vmem:[%s1 + $0x180] sm:$0xff]
      %v953 = vld [vmem:[%s1 + $0x188] sm:$0xff]
      %v954 = vld [vmem:[%s1 + $0x190] sm:$0xff]
      %v955 = vld [vmem:[%s1 + $0x198] sm:$0xff]
      %v956 = vld [vmem:[%s1 + $0x1a0] sm:$0xff]
      %v957 = vld [vmem:[%s1 + $0x1a8] sm:$0xff]
      %959 = vset.pattern.permute.xlu0 0
      %960 = vperm.xlu0 %959, %v904
      %v961 = vpop.permute.xlu0 %960
      %964 = vset.pattern.permute.xlu0 0
      %965 = vperm.xlu0 %964, %v905
      %v966 = vpop.permute.xlu0 %965
      %969 = vset.pattern.permute.xlu0 0
      %970 = vperm.xlu0 %969, %v906
      %v971 = vpop.permute.xlu0 %970
      %974 = vset.pattern.permute.xlu0 0
      %975 = vperm.xlu0 %974, %v907
      %v976 = vpop.permute.xlu0 %975
      %979 = vset.pattern.permute.xlu0 0
      %980 = vperm.xlu0 %979, %v908
      %v981 = vpop.permute.xlu0 %980
      %984 = vset.pattern.permute.xlu0 0
      %985 = vperm.xlu0 %984, %v909
      %v986 = vpop.permute.xlu0 %985
      %989 = vset.pattern.permute.xlu0 0
      %990 = vperm.xlu0 %989, %v910
      %v991 = vpop.permute.xlu0 %990
      %994 = vset.pattern.permute.xlu0 0
      %995 = vperm.xlu0 %994, %v911
      %v996 = vpop.permute.xlu0 %995
      %999 = vset.pattern.permute.xlu0 0
      %1000 = vperm.xlu0 %999, %v912
      %v1001 = vpop.permute.xlu0 %1000
      %1004 = vset.pattern.permute.xlu0 0
      %1005 = vperm.xlu0 %1004, %v913
      %v1006 = vpop.permute.xlu0 %1005
      %1009 = vset.pattern.permute.xlu0 0
      %1010 = vperm.xlu0 %1009, %v914
      %v1011 = vpop.permute.xlu0 %1010
      %1014 = vset.pattern.permute.xlu0 0
      %1015 = vperm.xlu0 %1014, %v915
      %v1016 = vpop.permute.xlu0 %1015
      %1019 = vset.pattern.permute.xlu0 0
      %1020 = vperm.xlu0 %1019, %v916
      %v1021 = vpop.permute.xlu0 %1020
      %1024 = vset.pattern.permute.xlu0 0
      %1025 = vperm.xlu0 %1024, %v917
      %v1026 = vpop.permute.xlu0 %1025
      %1029 = vset.pattern.permute.xlu0 0
      %1030 = vperm.xlu0 %1029, %v918
      %v1031 = vpop.permute.xlu0 %1030
      %1034 = vset.pattern.permute.xlu0 0
      %1035 = vperm.xlu0 %1034, %v919
      %v1036 = vpop.permute.xlu0 %1035
      %1039 = vset.pattern.permute.xlu0 0
      %1040 = vperm.xlu0 %1039, %v920
      %v1041 = vpop.permute.xlu0 %1040
      %1044 = vset.pattern.permute.xlu0 0
      %1045 = vperm.xlu0 %1044, %v921
      %v1046 = vpop.permute.xlu0 %1045
      %1049 = vset.pattern.permute.xlu0 0
      %1050 = vperm.xlu0 %1049, %v922
      %v1051 = vpop.permute.xlu0 %1050
      %1054 = vset.pattern.permute.xlu0 0
      %1055 = vperm.xlu0 %1054, %v923
      %v1056 = vpop.permute.xlu0 %1055
      %1059 = vset.pattern.permute.xlu0 0
      %1060 = vperm.xlu0 %1059, %v924
      %v1061 = vpop.permute.xlu0 %1060
      %1064 = vset.pattern.permute.xlu0 0
      %1065 = vperm.xlu0 %1064, %v925
      %v1066 = vpop.permute.xlu0 %1065
      %1069 = vset.pattern.permute.xlu0 0
      %1070 = vperm.xlu0 %1069, %v926
      %v1071 = vpop.permute.xlu0 %1070
      %1074 = vset.pattern.permute.xlu0 0
      %1075 = vperm.xlu0 %1074, %v927
      %v1076 = vpop.permute.xlu0 %1075
      %1079 = vset.pattern.permute.xlu0 0
      %1080 = vperm.xlu0 %1079, %v928
      %v1081 = vpop.permute.xlu0 %1080
      %1084 = vset.pattern.permute.xlu0 0
      %1085 = vperm.xlu0 %1084, %v929
      %v1086 = vpop.permute.xlu0 %1085
      %1089 = vset.pattern.permute.xlu0 0
      %1090 = vperm.xlu0 %1089, %v930
      %v1091 = vpop.permute.xlu0 %1090
      %1094 = vset.pattern.permute.xlu0 0
      %1095 = vperm.xlu0 %1094, %v931
      %v1096 = vpop.permute.xlu0 %1095
      %1099 = vset.pattern.permute.xlu0 0
      %1100 = vperm.xlu0 %1099, %v932
      %v1101 = vpop.permute.xlu0 %1100
      %1104 = vset.pattern.permute.xlu0 0
      %1105 = vperm.xlu0 %1104, %v933
      %v1106 = vpop.permute.xlu0 %1105
      %1109 = vset.pattern.permute.xlu0 0
      %1110 = vperm.xlu0 %1109, %v934
      %v1111 = vpop.permute.xlu0 %1110
      %1114 = vset.pattern.permute.xlu0 0
      %1115 = vperm.xlu0 %1114, %v935
      %v1116 = vpop.permute.xlu0 %1115
      %1119 = vset.pattern.permute.xlu0 0
      %1120 = vperm.xlu0 %1119, %v936
      %v1121 = vpop.permute.xlu0 %1120
      %1124 = vset.pattern.permute.xlu0 0
      %1125 = vperm.xlu0 %1124, %v937
      %v1126 = vpop.permute.xlu0 %1125
      %1129 = vset.pattern.permute.xlu0 0
      %1130 = vperm.xlu0 %1129, %v938
      %v1131 = vpop.permute.xlu0 %1130
      %1134 = vset.pattern.permute.xlu0 0
      %1135 = vperm.xlu0 %1134, %v939
      %v1136 = vpop.permute.xlu0 %1135
      %1139 = vset.pattern.permute.xlu0 0
      %1140 = vperm.xlu0 %1139, %v940
      %v1141 = vpop.permute.xlu0 %1140
      %1144 = vset.pattern.permute.xlu0 0
      %1145 = vperm.xlu0 %1144, %v941
      %v1146 = vpop.permute.xlu0 %1145
      %1149 = vset.pattern.permute.xlu0 0
      %1150 = vperm.xlu0 %1149, %v942
      %v1151 = vpop.permute.xlu0 %1150
      %1154 = vset.pattern.permute.xlu0 0
      %1155 = vperm.xlu0 %1154, %v943
      %v1156 = vpop.permute.xlu0 %1155
      %1159 = vset.pattern.permute.xlu0 0
      %1160 = vperm.xlu0 %1159, %v944
      %v1161 = vpop.permute.xlu0 %1160
      %1164 = vset.pattern.permute.xlu0 0
      %1165 = vperm.xlu0 %1164, %v945
      %v1166 = vpop.permute.xlu0 %1165
      %1169 = vset.pattern.permute.xlu0 0
      %1170 = vperm.xlu0 %1169, %v946
      %v1171 = vpop.permute.xlu0 %1170
      %1174 = vset.pattern.permute.xlu0 0
      %1175 = vperm.xlu0 %1174, %v947
      %v1176 = vpop.permute.xlu0 %1175
      %1179 = vset.pattern.permute.xlu0 0
      %1180 = vperm.xlu0 %1179, %v948
      %v1181 = vpop.permute.xlu0 %1180
      %1184 = vset.pattern.permute.xlu0 0
      %1185 = vperm.xlu0 %1184, %v949
      %v1186 = vpop.permute.xlu0 %1185
      %1189 = vset.pattern.permute.xlu0 0
      %1190 = vperm.xlu0 %1189, %v950
      %v1191 = vpop.permute.xlu0 %1190
      %1194 = vset.pattern.permute.xlu0 0
      %1195 = vperm.xlu0 %1194, %v951
      %v1196 = vpop.permute.xlu0 %1195
      %1199 = vset.pattern.permute.xlu0 0
      %1200 = vperm.xlu0 %1199, %v952
      %v1201 = vpop.permute.xlu0 %1200
      %1204 = vset.pattern.permute.xlu0 0
      %1205 = vperm.xlu0 %1204, %v953
      %v1206 = vpop.permute.xlu0 %1205
      %1209 = vset.pattern.permute.xlu0 0
      %1210 = vperm.xlu0 %1209, %v954
      %v1211 = vpop.permute.xlu0 %1210
      %1214 = vset.pattern.permute.xlu0 0
      %1215 = vperm.xlu0 %1214, %v955
      %v1216 = vpop.permute.xlu0 %1215
      %1219 = vset.pattern.permute.xlu0 0
      %1220 = vperm.xlu0 %1219, %v956
      %v1221 = vpop.permute.xlu0 %1220
      %1224 = vset.pattern.permute.xlu0 0
      %1225 = vperm.xlu0 %1224, %v957
      %v1226 = vpop.permute.xlu0 %1225
      %v1228 = vmul.f32 %v850, %v961
      %v1229 = vmul.f32 %v851, %v966
      %v1230 = vmul.f32 %v852, %v971
      %v1231 = vmul.f32 %v853, %v976
      %v1232 = vmul.f32 %v854, %v981
      %v1233 = vmul.f32 %v855, %v986
      %v1234 = vmul.f32 %v856, %v991
      %v1235 = vmul.f32 %v857, %v996
      %v1236 = vmul.f32 %v858, %v1001
      %v1237 = vmul.f32 %v859, %v1006
      %v1238 = vmul.f32 %v860, %v1011
      %v1239 = vmul.f32 %v861, %v1016
      %v1240 = vmul.f32 %v862, %v1021
      %v1241 = vmul.f32 %v863, %v1026
      %v1242 = vmul.f32 %v864, %v1031
      %v1243 = vmul.f32 %v865, %v1036
      %v1244 = vmul.f32 %v866, %v1041
      %v1245 = vmul.f32 %v867, %v1046
      %v1246 = vmul.f32 %v868, %v1051
      %v1247 = vmul.f32 %v869, %v1056
      %v1248 = vmul.f32 %v870, %v1061
      %v1249 = vmul.f32 %v871, %v1066
      %v1250 = vmul.f32 %v872, %v1071
      %v1251 = vmul.f32 %v873, %v1076
      %v1252 = vmul.f32 %v874, %v1081
      %v1253 = vmul.f32 %v875, %v1086
      %v1254 = vmul.f32 %v876, %v1091
      %v1255 = vmul.f32 %v877, %v1096
      %v1256 = vmul.f32 %v878, %v1101
      %v1257 = vmul.f32 %v879, %v1106
      %v1258 = vmul.f32 %v880, %v1111
      %v1259 = vmul.f32 %v881, %v1116
      %v1260 = vmul.f32 %v882, %v1121
      %v1261 = vmul.f32 %v883, %v1126
      %v1262 = vmul.f32 %v884, %v1131
      %v1263 = vmul.f32 %v885, %v1136
      %v1264 = vmul.f32 %v886, %v1141
      %v1265 = vmul.f32 %v887, %v1146
      %v1266 = vmul.f32 %v888, %v1151
      %v1267 = vmul.f32 %v889, %v1156
      %v1268 = vmul.f32 %v890, %v1161
      %v1269 = vmul.f32 %v891, %v1166
      %v1270 = vmul.f32 %v892, %v1171
      %v1271 = vmul.f32 %v893, %v1176
      %v1272 = vmul.f32 %v894, %v1181
      %v1273 = vmul.f32 %v895, %v1186
      %v1274 = vmul.f32 %v896, %v1191
      %v1275 = vmul.f32 %v897, %v1196
      %v1276 = vmul.f32 %v898, %v1201
      %v1277 = vmul.f32 %v899, %v1206
      %v1278 = vmul.f32 %v900, %v1211
      %v1279 = vmul.f32 %v901, %v1216
      %v1280 = vmul.f32 %v902, %v1221
      %v1281 = vmul.f32 %v903, %v1226
      %1282 = vst [vmem:[#allocation2] sm:$0xff] %v1228
      %1283 = vst [vmem:[#allocation2 + $0x8] sm:$0xff] %v1229
      %1284 = vst [vmem:[#allocation2 + $0x10] sm:$0xff] %v1230
      %1285 = vst [vmem:[#allocation2 + $0x18] sm:$0xff] %v1231
      %1286 = vst [vmem:[#allocation2 + $0x20] sm:$0xff] %v1232
      %1287 = vst [vmem:[#allocation2 + $0x28] sm:$0xff] %v1233
      %1288 = vst [vmem:[#allocation2 + $0x30] sm:$0xff] %v1234
      %1289 = vst [vmem:[#allocation2 + $0x38] sm:$0xff] %v1235
      %1290 = vst [vmem:[#allocation2 + $0x40] sm:$0xff] %v1236
      %1291 = vst [vmem:[#allocation2 + $0x48] sm:$0xff] %v1237
      %1292 = vst [vmem:[#allocation2 + $0x50] sm:$0xff] %v1238
      %1293 = vst [vmem:[#allocation2 + $0x58] sm:$0xff] %v1239
      %1294 = vst [vmem:[#allocation2 + $0x60] sm:$0xff] %v1240
      %1295 = vst [vmem:[#allocation2 + $0x68] sm:$0xff] %v1241
      %1296 = vst [vmem:[#allocation2 + $0x70] sm:$0xff] %v1242
      %1297 = vst [vmem:[#allocation2 + $0x78] sm:$0xff] %v1243
      %1298 = vst [vmem:[#allocation2 + $0x80] sm:$0xff] %v1244
      %1299 = vst [vmem:[#allocation2 + $0x88] sm:$0xff] %v1245
      %1300 = vst [vmem:[#allocation2 + $0x90] sm:$0xff] %v1246
      %1301 = vst [vmem:[#allocation2 + $0x98] sm:$0xff] %v1247
      %1302 = vst [vmem:[#allocation2 + $0xa0] sm:$0xff] %v1248
      %1303 = vst [vmem:[#allocation2 + $0xa8] sm:$0xff] %v1249
      %1304 = vst [vmem:[#allocation2 + $0xb0] sm:$0xff] %v1250
      %1305 = vst [vmem:[#allocation2 + $0xb8] sm:$0xff] %v1251
      %1306 = vst [vmem:[#allocation2 + $0xc0] sm:$0xff] %v1252
      %1307 = vst [vmem:[#allocation2 + $0xc8] sm:$0xff] %v1253
      %1308 = vst [vmem:[#allocation2 + $0xd0] sm:$0xff] %v1254
      %1309 = vst [vmem:[#allocation2 + $0xd8] sm:$0xff] %v1255
      %1310 = vst [vmem:[#allocation2 + $0xe0] sm:$0xff] %v1256
      %1311 = vst [vmem:[#allocation2 + $0xe8] sm:$0xff] %v1257
      %1312 = vst [vmem:[#allocation2 + $0xf0] sm:$0xff] %v1258
      %1313 = vst [vmem:[#allocation2 + $0xf8] sm:$0xff] %v1259
      %1314 = vst [vmem:[#allocation2 + $0x100] sm:$0xff] %v1260
      %1315 = vst [vmem:[#allocation2 + $0x108] sm:$0xff] %v1261
      %1316 = vst [vmem:[#allocation2 + $0x110] sm:$0xff] %v1262
      %1317 = vst [vmem:[#allocation2 + $0x118] sm:$0xff] %v1263
      %1318 = vst [vmem:[#allocation2 + $0x120] sm:$0xff] %v1264
      %1319 = vst [vmem:[#allocation2 + $0x128] sm:$0xff] %v1265
      %1320 = vst [vmem:[#allocation2 + $0x130] sm:$0xff] %v1266
      %1321 = vst [vmem:[#allocation2 + $0x138] sm:$0xff] %v1267
      %1322 = vst [vmem:[#allocation2 + $0x140] sm:$0xff] %v1268
      %1323 = vst [vmem:[#allocation2 + $0x148] sm:$0xff] %v1269
      %1324 = vst [vmem:[#allocation2 + $0x150] sm:$0xff] %v1270
      %1325 = vst [vmem:[#allocation2 + $0x158] sm:$0xff] %v1271
      %1326 = vst [vmem:[#allocation2 + $0x160] sm:$0xff] %v1272
      %1327 = vst [vmem:[#allocation2 + $0x168] sm:$0xff] %v1273
      %1328 = vst [vmem:[#allocation2 + $0x170] sm:$0xff] %v1274
      %1329 = vst [vmem:[#allocation2 + $0x178] sm:$0xff] %v1275
      %1330 = vst [vmem:[#allocation2 + $0x180] sm:$0xff] %v1276
      %1331 = vst [vmem:[#allocation2 + $0x188] sm:$0xff] %v1277
      %1332 = vst [vmem:[#allocation2 + $0x190] sm:$0xff] %v1278
      %1333 = vst [vmem:[#allocation2 + $0x198] sm:$0xff] %v1279
      %1334 = vst [vmem:[#allocation2 + $0x1a0] sm:$0xff] %v1280
      %1335 = vst [vmem:[#allocation2 + $0x1a8] sm:$0xff] %v1281
      %v1336 = vld [vmem:[#allocation2] ss:$2 sm:$0xff]
      %s1337 = scalar_lea.vmem [#allocation2], 48
      %v1338 = vld [vmem:[%s1337] ss:$2 sm:$0xff]
      %s1339 = scalar_lea.vmem [#allocation2], 96
      %v1340 = vld [vmem:[%s1339] ss:$2 sm:$0xff]
      %s1341 = scalar_lea.vmem [#allocation2], 144
      %v1342 = vld [vmem:[%s1341] ss:$2 sm:$0xff]
      %s1343 = scalar_lea.vmem [#allocation2], 192
      %v1344 = vld [vmem:[%s1343] ss:$2 sm:$0xff]
      %s1345 = scalar_lea.vmem [#allocation2], 240
      %v1346 = vld [vmem:[%s1345] ss:$2 sm:$0xff]
      %s1347 = scalar_lea.vmem [#allocation2], 288
      %v1348 = vld [vmem:[%s1347] ss:$2 sm:$0xff]
      %s1349 = scalar_lea.vmem [#allocation2], 336
      %v1350 = vld [vmem:[%s1349] ss:$2 sm:$0xff]
      %v1351 = vpack.c.bf16 %v1338, %v1336
      %v1352 = vpack.c.bf16 %v1342, %v1340
      %v1353 = vpack.c.bf16 %v1346, %v1344
      %v1354 = vpack.c.bf16 %v1350, %v1348
      %v1355 = vld [vmem:[%s4] sm:$0xf]
      %v1356 = vld [vmem:[%s4 + $0x4] sm:$0xf]
      %v1357 = vld [vmem:[%s4 + $0x8] sm:$0xf]
      %v1358 = vld [vmem:[%s4 + $0xc] sm:$0xf]
      %v1359 = vld [vmem:[%s4 + $0x10] sm:$0xf]
      %v1360 = vld [vmem:[%s4 + $0x14] sm:$0xf]
      %v1361 = vld [vmem:[%s4 + $0x18] sm:$0xf]
      %v1362 = vld [vmem:[%s4 + $0x1c] sm:$0xf]
      %v1363 = vld [vmem:[%s4 + $0x20] sm:$0xf]
      %v1364 = vld [vmem:[%s4 + $0x24] sm:$0xf]
      %v1365 = vld [vmem:[%s4 + $0x28] sm:$0xf]
      %v1366 = vld [vmem:[%s4 + $0x2c] sm:$0xf]
      %v1367 = vld [vmem:[%s4 + $0x30] sm:$0xf]
      %v1368 = vld [vmem:[%s4 + $0x34] sm:$0xf]
      %v1369 = vld [vmem:[%s4 + $0x38] sm:$0xf]
      %v1370 = vld [vmem:[%s4 + $0x3c] sm:$0xf]
      %s1371 = scalar_lea.vmem [#allocation2], 1
      %v1372 = vld [vmem:[%s1371] ss:$2 sm:$0xff]
      %s1373 = scalar_lea.vmem [#allocation2], 49
      %v1374 = vld [vmem:[%s1373] ss:$2 sm:$0xff]
      %s1375 = scalar_lea.vmem [#allocation2], 97
      %v1376 = vld [vmem:[%s1375] ss:$2 sm:$0xff]
      %s1377 = scalar_lea.vmem [#allocation2], 145
      %v1378 = vld [vmem:[%s1377] ss:$2 sm:$0xff]
      %s1379 = scalar_lea.vmem [#allocation2], 193
      %v1380 = vld [vmem:[%s1379] ss:$2 sm:$0xff]
      %s1381 = scalar_lea.vmem [#allocation2], 241
      %v1382 = vld [vmem:[%s1381] ss:$2 sm:$0xff]
      %s1383 = scalar_lea.vmem [#allocation2], 289
      %v1384 = vld [vmem:[%s1383] ss:$2 sm:$0xff]
      %s1385 = scalar_lea.vmem [#allocation2], 337
      %v1386 = vld [vmem:[%s1385] ss:$2 sm:$0xff]
      %v1387 = vpack.c.bf16 %v1374, %v1372
      %v1388 = vpack.c.bf16 %v1378, %v1376
      %v1389 = vpack.c.bf16 %v1382, %v1380
      %v1390 = vpack.c.bf16 %v1386, %v1384
      %s1391 = scalar_lea.vmem %s4, 64
      %v1392 = vld [vmem:[%s1391] sm:$0xf]
      %v1393 = vld [vmem:[%s1391 + $0x4] sm:$0xf]
      %v1394 = vld [vmem:[%s1391 + $0x8] sm:$0xf]
      %v1395 = vld [vmem:[%s1391 + $0xc] sm:$0xf]
      %v1396 = vld [vmem:[%s1391 + $0x10] sm:$0xf]
      %v1397 = vld [vmem:[%s1391 + $0x14] sm:$0xf]
      %v1398 = vld [vmem:[%s1391 + $0x18] sm:$0xf]
      %v1399 = vld [vmem:[%s1391 + $0x1c] sm:$0xf]
      %v1400 = vld [vmem:[%s1391 + $0x20] sm:$0xf]
      %v1401 = vld [vmem:[%s1391 + $0x24] sm:$0xf]
      %v1402 = vld [vmem:[%s1391 + $0x28] sm:$0xf]
      %v1403 = vld [vmem:[%s1391 + $0x2c] sm:$0xf]
      %v1404 = vld [vmem:[%s1391 + $0x30] sm:$0xf]
      %v1405 = vld [vmem:[%s1391 + $0x34] sm:$0xf]
      %v1406 = vld [vmem:[%s1391 + $0x38] sm:$0xf]
      %v1407 = vld [vmem:[%s1391 + $0x3c] sm:$0xf]
      %v1424 = vunpack.c.l.b16 %v1392
      %v1425 = vunpack.c.l.b16 %v1393
      %v1426 = vunpack.c.l.b16 %v1394
      %v1427 = vunpack.c.l.b16 %v1395
      %v1428 = vunpack.c.l.b16 %v1396
      %v1429 = vunpack.c.l.b16 %v1397
      %v1430 = vunpack.c.l.b16 %v1398
      %v1431 = vunpack.c.l.b16 %v1399
      %v1432 = vunpack.c.l.b16 %v1400
      %v1433 = vunpack.c.l.b16 %v1401
      %v1434 = vunpack.c.l.b16 %v1402
      %v1435 = vunpack.c.l.b16 %v1403
      %v1436 = vunpack.c.l.b16 %v1404
      %v1437 = vunpack.c.l.b16 %v1405
      %v1438 = vunpack.c.l.b16 %v1406
      %v1439 = vunpack.c.l.b16 %v1407
      %v1440 = vpack.c.b16 %v1425, %v1424
      %v1441 = vpack.c.b16 %v1427, %v1426
      %v1442 = vpack.c.b16 %v1429, %v1428
      %v1443 = vpack.c.b16 %v1431, %v1430
      %v1444 = vpack.c.b16 %v1433, %v1432
      %v1445 = vpack.c.b16 %v1435, %v1434
      %v1446 = vpack.c.b16 %v1437, %v1436
      %v1447 = vpack.c.b16 %v1439, %v1438
      %1456 = vmatprep.subr.bf16.mxu0 0
      %1457 = vmatpush1.bf16.msra.mxu0 %v1440
      %1458 = vmatprep.subr.bf16.mxu0 0
      %1459 = vmatpush1.bf16.msra.mxu0 %v1441
      %1460 = vmatprep.subr.bf16.mxu0 0
      %1461 = vmatpush1.bf16.msra.mxu0 %v1442
      %1462 = vmatprep.subr.bf16.mxu0 0
      %1463 = vmatpush1.bf16.msra.mxu0 %v1443
      %1464 = vmatprep.subr.bf16.mxu0 0
      %1465 = vmatpush1.bf16.msra.mxu0 %v1444
      %1466 = vmatprep.subr.bf16.mxu0 0
      %1467 = vmatpush1.bf16.msra.mxu0 %v1445
      %1468 = vmatprep.subr.bf16.mxu0 0
      %1469 = vmatpush1.bf16.msra.mxu0 %v1446
      %1470 = vmatprep.subr.bf16.mxu0 0
      %1471 = vmatpush1.bf16.msra.mxu0 %v1447
      %1472 = vmatprep.subr.bf16.mxu0 0
      %1473 = vmatpush1.bf16.msra.mxu0 0
      %1474 = vmatprep.subr.bf16.mxu0 0
      %1475 = vmatpush1.bf16.msra.mxu0 0
      %1476 = vmatprep.subr.bf16.mxu0 0
      %1477 = vmatpush1.bf16.msra.mxu0 0
      %1478 = vmatprep.subr.bf16.mxu0 0
      %1479 = vmatpush1.bf16.msra.mxu0 0
      %1480 = vmatprep.subr.bf16.mxu0 0
      %1481 = vmatpush1.bf16.msra.mxu0 0
      %1482 = vmatprep.subr.bf16.mxu0 0
      %1483 = vmatpush1.bf16.msra.mxu0 0
      %1484 = vmatprep.subr.bf16.mxu0 0
      %1485 = vmatpush1.bf16.msra.mxu0 0
      %1486 = vmatprep.subr.bf16.mxu0 0
      %1487 = vmatpush1.bf16.msra.mxu0 0
      %1488 = vmatprep.mubr.bf16.mxu0 0
      %1489 = vmatmul.mubr.bf16.gmra.mrb[0].mxu0 %v1387
      %v1490 = vpop.f32.mrb[0].mxu0
      %v1491 = vadd.f32 0.0, %v1490
      %v1492 = vpop.f32.mrb[0].mxu0
      %v1493 = vpop.f32.mrb[0].mxu0
      %v1494 = vadd.f32 0.0, %v1493
      %v1495 = vpop.f32.mrb[0].mxu0
      %1496 = vmatprep.mubr.bf16.mxu0 0
      %1497 = vmatmul.mubr.bf16.gmra.mrb[0].mxu0 %v1388
      %v1498 = vpop.f32.mrb[0].mxu0
      %v1499 = vadd.f32 0.0, %v1498
      %v1500 = vpop.f32.mrb[0].mxu0
      %v1501 = vpop.f32.mrb[0].mxu0
      %v1502 = vadd.f32 0.0, %v1501
      %v1503 = vpop.f32.mrb[0].mxu0
      %1504 = vmatprep.mubr.bf16.mxu0 0
      %1505 = vmatmul.mubr.bf16.gmra.mrb[0].mxu0 %v1389
      %v1506 = vpop.f32.mrb[0].mxu0
      %v1507 = vadd.f32 0.0, %v1506
      %v1508 = vpop.f32.mrb[0].mxu0
      %v1509 = vpop.f32.mrb[0].mxu0
      %v1510 = vadd.f32 0.0, %v1509
      %v1511 = vpop.f32.mrb[0].mxu0
      %1512 = vmatprep.mubr.bf16.mxu0 0
      %1513 = vmatmul.mubr.bf16.gmra.mrb[0].mxu0 %v1390
      %v1514 = vpop.f32.mrb[0].mxu0
      %v1515 = vadd.f32 0.0, %v1514
      %v1516 = vpop.f32.mrb[0].mxu0
      %v1517 = vpop.f32.mrb[0].mxu0
      %v1518 = vadd.f32 0.0, %v1517
      %v1519 = vpop.f32.mrb[0].mxu0
      %1520 = vdwg.mxu0
      %v1537 = vunpack.c.l.b16 %v1355
      %v1538 = vunpack.c.l.b16 %v1356
      %v1539 = vunpack.c.l.b16 %v1357
      %v1540 = vunpack.c.l.b16 %v1358
      %v1541 = vunpack.c.l.b16 %v1359
      %v1542 = vunpack.c.l.b16 %v1360
      %v1543 = vunpack.c.l.b16 %v1361
      %v1544 = vunpack.c.l.b16 %v1362
      %v1545 = vunpack.c.l.b16 %v1363
      %v1546 = vunpack.c.l.b16 %v1364
      %v1547 = vunpack.c.l.b16 %v1365
      %v1548 = vunpack.c.l.b16 %v1366
      %v1549 = vunpack.c.l.b16 %v1367
      %v1550 = vunpack.c.l.b16 %v1368
      %v1551 = vunpack.c.l.b16 %v1369
      %v1552 = vunpack.c.l.b16 %v1370
      %v1553 = vpack.c.b16 %v1538, %v1537
      %v1554 = vpack.c.b16 %v1540, %v1539
      %v1555 = vpack.c.b16 %v1542, %v1541
      %v1556 = vpack.c.b16 %v1544, %v1543
      %v1557 = vpack.c.b16 %v1546, %v1545
      %v1558 = vpack.c.b16 %v1548, %v1547
      %v1559 = vpack.c.b16 %v1550, %v1549
      %v1560 = vpack.c.b16 %v1552, %v1551
      %1569 = vmatprep.subr.bf16.mxu0 0
      %1570 = vmatpush1.bf16.msra.mxu0 %v1553
      %1571 = vmatprep.subr.bf16.mxu0 0
      %1572 = vmatpush1.bf16.msra.mxu0 %v1554
      %1573 = vmatprep.subr.bf16.mxu0 0
      %1574 = vmatpush1.bf16.msra.mxu0 %v1555
      %1575 = vmatprep.subr.bf16.mxu0 0
      %1576 = vmatpush1.bf16.msra.mxu0 %v1556
      %1577 = vmatprep.subr.bf16.mxu0 0
      %1578 = vmatpush1.bf16.msra.mxu0 %v1557
      %1579 = vmatprep.subr.bf16.mxu0 0
      %1580 = vmatpush1.bf16.msra.mxu0 %v1558
      %1581 = vmatprep.subr.bf16.mxu0 0
      %1582 = vmatpush1.bf16.msra.mxu0 %v1559
      %1583 = vmatprep.subr.bf16.mxu0 0
      %1584 = vmatpush1.bf16.msra.mxu0 %v1560
      %1585 = vmatprep.subr.bf16.mxu0 0
      %1586 = vmatpush1.bf16.msra.mxu0 0
      %1587 = vmatprep.subr.bf16.mxu0 0
      %1588 = vmatpush1.bf16.msra.mxu0 0
      %1589 = vmatprep.subr.bf16.mxu0 0
      %1590 = vmatpush1.bf16.msra.mxu0 0
      %1591 = vmatprep.subr.bf16.mxu0 0
      %1592 = vmatpush1.bf16.msra.mxu0 0
      %1593 = vmatprep.subr.bf16.mxu0 0
      %1594 = vmatpush1.bf16.msra.mxu0 0
      %1595 = vmatprep.subr.bf16.mxu0 0
      %1596 = vmatpush1.bf16.msra.mxu0 0
      %1597 = vmatprep.subr.bf16.mxu0 0
      %1598 = vmatpush1.bf16.msra.mxu0 0
      %1599 = vmatprep.subr.bf16.mxu0 0
      %1600 = vmatpush1.bf16.msra.mxu0 0
      %1601 = vmatprep.mubr.bf16.mxu0 0
      %1602 = vmatmul.mubr.bf16.gmra.mrb[0].mxu0 %v1351
      %v1603 = vpop.f32.mrb[0].mxu0
      %v1604 = vadd.f32 %v1491, %v1603
      %v1605 = vpop.f32.mrb[0].mxu0
      %v1606 = vpop.f32.mrb[0].mxu0
      %v1607 = vadd.f32 %v1494, %v1606
      %v1608 = vpop.f32.mrb[0].mxu0
      %1609 = vmatprep.mubr.bf16.mxu0 0
      %1610 = vmatmul.mubr.bf16.gmra.mrb[0].mxu0 %v1352
      %v1611 = vpop.f32.mrb[0].mxu0
      %v1612 = vadd.f32 %v1499, %v1611
      %v1613 = vpop.f32.mrb[0].mxu0
      %v1614 = vpop.f32.mrb[0].mxu0
      %v1615 = vadd.f32 %v1502, %v1614
      %v1616 = vpop.f32.mrb[0].mxu0
      %1617 = vmatprep.mubr.bf16.mxu0 0
      %1618 = vmatmul.mubr.bf16.gmra.mrb[0].mxu0 %v1353
      %v1619 = vpop.f32.mrb[0].mxu0
      %v1620 = vadd.f32 %v1507, %v1619
      %v1621 = vpop.f32.mrb[0].mxu0
      %v1622 = vpop.f32.mrb[0].mxu0
      %v1623 = vadd.f32 %v1510, %v1622
      %v1624 = vpop.f32.mrb[0].mxu0
      %1625 = vmatprep.mubr.bf16.mxu0 0
      %1626 = vmatmul.mubr.bf16.gmra.mrb[0].mxu0 %v1354
      %v1627 = vpop.f32.mrb[0].mxu0
      %v1628 = vadd.f32 %v1515, %v1627
      %v1629 = vpop.f32.mrb[0].mxu0
      %v1630 = vpop.f32.mrb[0].mxu0
      %v1631 = vadd.f32 %v1518, %v1630
      %v1632 = vpop.f32.mrb[0].mxu0
      %1633 = vdwg.mxu0
      %s1634 = scalar_lea.vmem [#allocation2], 2
      %v1635 = vld [vmem:[%s1634] ss:$2 sm:$0xff]
      %s1636 = scalar_lea.vmem [#allocation2], 50
      %v1637 = vld [vmem:[%s1636] ss:$2 sm:$0xff]
      %s1638 = scalar_lea.vmem [#allocation2], 98
      %v1639 = vld [vmem:[%s1638] ss:$2 sm:$0xff]
      %s1640 = scalar_lea.vmem [#allocation2], 146
      %v1641 = vld [vmem:[%s1640] ss:$2 sm:$0xff]
      %s1642 = scalar_lea.vmem [#allocation2], 194
      %v1643 = vld [vmem:[%s1642] ss:$2 sm:$0xff]
      %s1644 = scalar_lea.vmem [#allocation2], 242
      %v1645 = vld [vmem:[%s1644] ss:$2 sm:$0xff]
      %s1646 = scalar_lea.vmem [#allocation2], 290
      %v1647 = vld [vmem:[%s1646] ss:$2 sm:$0xff]
      %s1648 = scalar_lea.vmem [#allocation2], 338
      %v1649 = vld [vmem:[%s1648] ss:$2 sm:$0xff]
      %v1650 = vpack.c.bf16 %v1637, %v1635
      %v1651 = vpack.c.bf16 %v1641, %v1639
      %v1652 = vpack.c.bf16 %v1645, %v1643
      %v1653 = vpack.c.bf16 %v1649, %v1647
      %s1654 = scalar_lea.vmem %s4, 128
      %v1655 = vld [vmem:[%s1654] sm:$0xf]
      %v1656 = vld [vmem:[%s1654 + $0x4] sm:$0xf]
      %v1657 = vld [vmem:[%s1654 + $0x8] sm:$0xf]
      %v1658 = vld [vmem:[%s1654 + $0xc] sm:$0xf]
      %v1659 = vld [vmem:[%s1654 + $0x10] sm:$0xf]
      %v1660 = vld [vmem:[%s1654 + $0x14] sm:$0xf]
      %v1661 = vld [vmem:[%s1654 + $0x18] sm:$0xf]
      %v1662 = vld [vmem:[%s1654 + $0x1c] sm:$0xf]
      %v1663 = vld [vmem:[%s1654 + $0x20] sm:$0xf]
      %v1664 = vld [vmem:[%s1654 + $0x24] sm:$0xf]
      %v1665 = vld [vmem:[%s1654 + $0x28] sm:$0xf]
      %v1666 = vld [vmem:[%s1654 + $0x2c] sm:$0xf]
      %v1667 = vld [vmem:[%s1654 + $0x30] sm:$0xf]
      %v1668 = vld [vmem:[%s1654 + $0x34] sm:$0xf]
      %v1669 = vld [vmem:[%s1654 + $0x38] sm:$0xf]
      %v1670 = vld [vmem:[%s1654 + $0x3c] sm:$0xf]
      %v1687 = vunpack.c.l.b16 %v1655
      %v1688 = vunpack.c.l.b16 %v1656
      %v1689 = vunpack.c.l.b16 %v1657
      %v1690 = vunpack.c.l.b16 %v1658
      %v1691 = vunpack.c.l.b16 %v1659
      %v1692 = vunpack.c.l.b16 %v1660
      %v1693 = vunpack.c.l.b16 %v1661
      %v1694 = vunpack.c.l.b16 %v1662
      %v1695 = vunpack.c.l.b16 %v1663
      %v1696 = vunpack.c.l.b16 %v1664
      %v1697 = vunpack.c.l.b16 %v1665
      %v1698 = vunpack.c.l.b16 %v1666
      %v1699 = vunpack.c.l.b16 %v1667
      %v1700 = vunpack.c.l.b16 %v1668
      %v1701 = vunpack.c.l.b16 %v1669
      %v1702 = vunpack.c.l.b16 %v1670
      %v1703 = vpack.c.b16 %v1688, %v1687
      %v1704 = vpack.c.b16 %v1690, %v1689
      %v1705 = vpack.c.b16 %v1692, %v1691
      %v1706 = vpack.c.b16 %v1694, %v1693
      %v1707 = vpack.c.b16 %v1696, %v1695
      %v1708 = vpack.c.b16 %v1698, %v1697
      %v1709 = vpack.c.b16 %v1700, %v1699
      %v1710 = vpack.c.b16 %v1702, %v1701
      %1719 = vmatprep.subr.bf16.mxu0 0
      %1720 = vmatpush1.bf16.msra.mxu0 %v1703
      %1721 = vmatprep.subr.bf16.mxu0 0
      %1722 = vmatpush1.bf16.msra.mxu0 %v1704
      %1723 = vmatprep.subr.bf16.mxu0 0
      %1724 = vmatpush1.bf16.msra.mxu0 %v1705
      %1725 = vmatprep.subr.bf16.mxu0 0
      %1726 = vmatpush1.bf16.msra.mxu0 %v1706
      %1727 = vmatprep.subr.bf16.mxu0 0
      %1728 = vmatpush1.bf16.msra.mxu0 %v1707
      %1729 = vmatprep.subr.bf16.mxu0 0
      %1730 = vmatpush1.bf16.msra.mxu0 %v1708
      %1731 = vmatprep.subr.bf16.mxu0 0
      %1732 = vmatpush1.bf16.msra.mxu0 %v1709
      %1733 = vmatprep.subr.bf16.mxu0 0
      %1734 = vmatpush1.bf16.msra.mxu0 %v1710
      %1735 = vmatprep.subr.bf16.mxu0 0
      %1736 = vmatpush1.bf16.msra.mxu0 0
      %1737 = vmatprep.subr.bf16.mxu0 0
      %1738 = vmatpush1.bf16.msra.mxu0 0
      %1739 = vmatprep.subr.bf16.mxu0 0
      %1740 = vmatpush1.bf16.msra.mxu0 0
      %1741 = vmatprep.subr.bf16.mxu0 0
      %1742 = vmatpush1.bf16.msra.mxu0 0
      %1743 = vmatprep.subr.bf16.mxu0 0
      %1744 = vmatpush1.bf16.msra.mxu0 0
      %1745 = vmatprep.subr.bf16.mxu0 0
      %1746 = vmatpush1.bf16.msra.mxu0 0
      %1747 = vmatprep.subr.bf16.mxu0 0
      %1748 = vmatpush1.bf16.msra.mxu0 0
      %1749 = vmatprep.subr.bf16.mxu0 0
      %1750 = vmatpush1.bf16.msra.mxu0 0
      %1751 = vmatprep.mubr.bf16.mxu0 0
      %1752 = vmatmul.mubr.bf16.gmra.mrb[0].mxu0 %v1650
      %v1753 = vpop.f32.mrb[0].mxu0
      %v1754 = vadd.f32 0.0, %v1753
      %v1755 = vpop.f32.mrb[0].mxu0
      %v1756 = vpop.f32.mrb[0].mxu0
      %v1757 = vadd.f32 0.0, %v1756
      %v1758 = vpop.f32.mrb[0].mxu0
      %1759 = vmatprep.mubr.bf16.mxu0 0
      %1760 = vmatmul.mubr.bf16.gmra.mrb[0].mxu0 %v1651
      %v1761 = vpop.f32.mrb[0].mxu0
      %v1762 = vadd.f32 0.0, %v1761
      %v1763 = vpop.f32.mrb[0].mxu0
      %v1764 = vpop.f32.mrb[0].mxu0
      %v1765 = vadd.f32 0.0, %v1764
      %v1766 = vpop.f32.mrb[0].mxu0
      %1767 = vmatprep.mubr.bf16.mxu0 0
      %1768 = vmatmul.mubr.bf16.gmra.mrb[0].mxu0 %v1652
      %v1769 = vpop.f32.mrb[0].mxu0
      %v1770 = vadd.f32 0.0, %v1769
      %v1771 = vpop.f32.mrb[0].mxu0
      %v1772 = vpop.f32.mrb[0].mxu0
      %v1773 = vadd.f32 0.0, %v1772
      %v1774 = vpop.f32.mrb[0].mxu0
      %1775 = vmatprep.mubr.bf16.mxu0 0
      %1776 = vmatmul.mubr.bf16.gmra.mrb[0].mxu0 %v1653
      %v1777 = vpop.f32.mrb[0].mxu0
      %v1778 = vadd.f32 0.0, %v1777
      %v1779 = vpop.f32.mrb[0].mxu0
      %v1780 = vpop.f32.mrb[0].mxu0
      %v1781 = vadd.f32 0.0, %v1780
      %v1782 = vpop.f32.mrb[0].mxu0
      %1783 = vdwg.mxu0
      %v1784 = vadd.f32 %v1604, %v1754
      %v1785 = vadd.f32 %v1607, %v1757
      %v1786 = vadd.f32 %v1612, %v1762
      %v1787 = vadd.f32 %v1615, %v1765
      %v1788 = vadd.f32 %v1620, %v1770
      %v1789 = vadd.f32 %v1623, %v1773
      %v1790 = vadd.f32 %v1628, %v1778
      %v1791 = vadd.f32 %v1631, %v1781
      %s1792 = scalar_lea.vmem [#allocation2], 24
      %v1793 = vld [vmem:[%s1792] ss:$2 sm:$0xff]
      %s1794 = scalar_lea.vmem %s1792, 48 [#allocation2]
      %v1795 = vld [vmem:[%s1794] ss:$2 sm:$0xff]
      %s1796 = scalar_lea.vmem %s1792, 96 [#allocation2]
      %v1797 = vld [vmem:[%s1796] ss:$2 sm:$0xff]
      %s1798 = scalar_lea.vmem %s1792, 144 [#allocation2]
      %v1799 = vld [vmem:[%s1798] ss:$2 sm:$0xff]
      %s1800 = scalar_lea.vmem %s1792, 192 [#allocation2]
      %v1801 = vld [vmem:[%s1800] ss:$2 sm:$0xff]
      %s1802 = scalar_lea.vmem %s1792, 240 [#allocation2]
      %v1803 = vld [vmem:[%s1802] ss:$2 sm:$0xff]
      %s1804 = scalar_lea.vmem %s1792, 288 [#allocation2]
      %v1805 = vld [vmem:[%s1804] ss:$2 sm:$0xff]
      %s1806 = scalar_lea.vmem %s1792, 336 [#allocation2]
      %v1807 = vld [vmem:[%s1806] ss:$2 sm:$0xff]
      %v1808 = vpack.c.bf16 %v1795, %v1793
      %v1809 = vpack.c.bf16 %v1799, %v1797
      %v1810 = vpack.c.bf16 %v1803, %v1801
      %v1811 = vpack.c.bf16 %v1807, %v1805
      %s1812 = scalar_lea.vmem %s4, 192
      %v1813 = vld [vmem:[%s1812] sm:$0xf]
      %v1814 = vld [vmem:[%s1812 + $0x4] sm:$0xf]
      %v1815 = vld [vmem:[%s1812 + $0x8] sm:$0xf]
      %v1816 = vld [vmem:[%s1812 + $0xc] sm:$0xf]
      %v1817 = vld [vmem:[%s1812 + $0x10] sm:$0xf]
      %v1818 = vld [vmem:[%s1812 + $0x14] sm:$0xf]
      %v1819 = vld [vmem:[%s1812 + $0x18] sm:$0xf]
      %v1820 = vld [vmem:[%s1812 + $0x1c] sm:$0xf]
      %v1821 = vld [vmem:[%s1812 + $0x20] sm:$0xf]
      %v1822 = vld [vmem:[%s1812 + $0x24] sm:$0xf]
      %v1823 = vld [vmem:[%s1812 + $0x28] sm:$0xf]
      %v1824 = vld [vmem:[%s1812 + $0x2c] sm:$0xf]
      %v1825 = vld [vmem:[%s1812 + $0x30] sm:$0xf]
      %v1826 = vld [vmem:[%s1812 + $0x34] sm:$0xf]
      %v1827 = vld [vmem:[%s1812 + $0x38] sm:$0xf]
      %v1828 = vld [vmem:[%s1812 + $0x3c] sm:$0xf]
      %v1845 = vunpack.c.l.b16 %v1813
      %v1846 = vunpack.c.l.b16 %v1814
      %v1847 = vunpack.c.l.b16 %v1815
      %v1848 = vunpack.c.l.b16 %v1816
      %v1849 = vunpack.c.l.b16 %v1817
      %v1850 = vunpack.c.l.b16 %v1818
      %v1851 = vunpack.c.l.b16 %v1819
      %v1852 = vunpack.c.l.b16 %v1820
      %v1853 = vunpack.c.l.b16 %v1821
      %v1854 = vunpack.c.l.b16 %v1822
      %v1855 = vunpack.c.l.b16 %v1823
      %v1856 = vunpack.c.l.b16 %v1824
      %v1857 = vunpack.c.l.b16 %v1825
      %v1858 = vunpack.c.l.b16 %v1826
      %v1859 = vunpack.c.l.b16 %v1827
      %v1860 = vunpack.c.l.b16 %v1828
      %v1861 = vpack.c.b16 %v1846, %v1845
      %v1862 = vpack.c.b16 %v1848, %v1847
      %v1863 = vpack.c.b16 %v1850, %v1849
      %v1864 = vpack.c.b16 %v1852, %v1851
      %v1865 = vpack.c.b16 %v1854, %v1853
      %v1866 = vpack.c.b16 %v1856, %v1855
      %v1867 = vpack.c.b16 %v1858, %v1857
      %v1868 = vpack.c.b16 %v1860, %v1859
      %1877 = vmatprep.subr.bf16.mxu0 0
      %1878 = vmatpush1.bf16.msra.mxu0 %v1861
      %1879 = vmatprep.subr.bf16.mxu0 0
      %1880 = vmatpush1.bf16.msra.mxu0 %v1862
      %1881 = vmatprep.subr.bf16.mxu0 0
      %1882 = vmatpush1.bf16.msra.mxu0 %v1863
      %1883 = vmatprep.subr.bf16.mxu0 0
      %1884 = vmatpush1.bf16.msra.mxu0 %v1864
      %1885 = vmatprep.subr.bf16.mxu0 0
      %1886 = vmatpush1.bf16.msra.mxu0 %v1865
      %1887 = vmatprep.subr.bf16.mxu0 0
      %1888 = vmatpush1.bf16.msra.mxu0 %v1866
      %1889 = vmatprep.subr.bf16.mxu0 0
      %1890 = vmatpush1.bf16.msra.mxu0 %v1867
      %1891 = vmatprep.subr.bf16.mxu0 0
      %1892 = vmatpush1.bf16.msra.mxu0 %v1868
      %1893 = vmatprep.subr.bf16.mxu0 0
      %1894 = vmatpush1.bf16.msra.mxu0 0
      %1895 = vmatprep.subr.bf16.mxu0 0
      %1896 = vmatpush1.bf16.msra.mxu0 0
      %1897 = vmatprep.subr.bf16.mxu0 0
      %1898 = vmatpush1.bf16.msra.mxu0 0
      %1899 = vmatprep.subr.bf16.mxu0 0
      %1900 = vmatpush1.bf16.msra.mxu0 0
      %1901 = vmatprep.subr.bf16.mxu0 0
      %1902 = vmatpush1.bf16.msra.mxu0 0
      %1903 = vmatprep.subr.bf16.mxu0 0
      %1904 = vmatpush1.bf16.msra.mxu0 0
      %1905 = vmatprep.subr.bf16.mxu0 0
      %1906 = vmatpush1.bf16.msra.mxu0 0
      %1907 = vmatprep.subr.bf16.mxu0 0
      %1908 = vmatpush1.bf16.msra.mxu0 0
      %1909 = vmatprep.mubr.bf16.mxu0 0
      %1910 = vmatmul.mubr.bf16.gmra.mrb[0].mxu0 %v1808
      %v1911 = vpop.f32.mrb[0].mxu0
      %v1912 = vadd.f32 0.0, %v1911
      %v1913 = vpop.f32.mrb[0].mxu0
      %v1914 = vpop.f32.mrb[0].mxu0
      %v1915 = vadd.f32 0.0, %v1914
      %v1916 = vpop.f32.mrb[0].mxu0
      %1917 = vmatprep.mubr.bf16.mxu0 0
      %1918 = vmatmul.mubr.bf16.gmra.mrb[0].mxu0 %v1809
      %v1919 = vpop.f32.mrb[0].mxu0
      %v1920 = vadd.f32 0.0, %v1919
      %v1921 = vpop.f32.mrb[0].mxu0
      %v1922 = vpop.f32.mrb[0].mxu0
      %v1923 = vadd.f32 0.0, %v1922
      %v1924 = vpop.f32.mrb[0].mxu0
      %1925 = vmatprep.mubr.bf16.mxu0 0
      %1926 = vmatmul.mubr.bf16.gmra.mrb[0].mxu0 %v1810
      %v1927 = vpop.f32.mrb[0].mxu0
      %v1928 = vadd.f32 0.0, %v1927
      %v1929 = vpop.f32.mrb[0].mxu0
      %v1930 = vpop.f32.mrb[0].mxu0
      %v1931 = vadd.f32 0.0, %v1930
      %v1932 = vpop.f32.mrb[0].mxu0
      %1933 = vmatprep.mubr.bf16.mxu0 0
      %1934 = vmatmul.mubr.bf16.gmra.mrb[0].mxu0 %v1811
      %v1935 = vpop.f32.mrb[0].mxu0
      %v1936 = vadd.f32 0.0, %v1935
      %v1937 = vpop.f32.mrb[0].mxu0
      %v1938 = vpop.f32.mrb[0].mxu0
      %v1939 = vadd.f32 0.0, %v1938
      %v1940 = vpop.f32.mrb[0].mxu0
      %1941 = vdwg.mxu0
      %v1942 = vadd.f32 %v1784, %v1912
      %v1943 = vadd.f32 %v1785, %v1915
      %v1944 = vadd.f32 %v1786, %v1920
      %v1945 = vadd.f32 %v1787, %v1923
      %v1946 = vadd.f32 %v1788, %v1928
      %v1947 = vadd.f32 %v1789, %v1931
      %v1948 = vadd.f32 %v1790, %v1936
      %v1949 = vadd.f32 %v1791, %v1939
      %s1950 = scalar_lea.vmem %s1792, 1 [#allocation2]
      %v1951 = vld [vmem:[%s1950] ss:$2 sm:$0xff]
      %s1952 = scalar_lea.vmem %s1792, 49 [#allocation2]
      %v1953 = vld [vmem:[%s1952] ss:$2 sm:$0xff]
      %s1954 = scalar_lea.vmem %s1792, 97 [#allocation2]
      %v1955 = vld [vmem:[%s1954] ss:$2 sm:$0xff]
      %s1956 = scalar_lea.vmem %s1792, 145 [#allocation2]
      %v1957 = vld [vmem:[%s1956] ss:$2 sm:$0xff]
      %s1958 = scalar_lea.vmem %s1792, 193 [#allocation2]
      %v1959 = vld [vmem:[%s1958] ss:$2 sm:$0xff]
      %s1960 = scalar_lea.vmem %s1792, 241 [#allocation2]
      %v1961 = vld [vmem:[%s1960] ss:$2 sm:$0xff]
      %s1962 = scalar_lea.vmem %s1792, 289 [#allocation2]
      %v1963 = vld [vmem:[%s1962] ss:$2 sm:$0xff]
      %s1964 = scalar_lea.vmem %s1792, 337 [#allocation2]
      %v1965 = vld [vmem:[%s1964] ss:$2 sm:$0xff]
      %v1966 = vpack.c.bf16 %v1953, %v1951
      %v1967 = vpack.c.bf16 %v1957, %v1955
      %v1968 = vpack.c.bf16 %v1961, %v1959
      %v1969 = vpack.c.bf16 %v1965, %v1963
      %s1970 = scalar_lea.vmem %s4, 256
      %v1971 = vld [vmem:[%s1970] sm:$0xf]
      %v1972 = vld [vmem:[%s1970 + $0x4] sm:$0xf]
      %v1973 = vld [vmem:[%s1970 + $0x8] sm:$0xf]
      %v1974 = vld [vmem:[%s1970 + $0xc] sm:$0xf]
      %v1975 = vld [vmem:[%s1970 + $0x10] sm:$0xf]
      %v1976 = vld [vmem:[%s1970 + $0x14] sm:$0xf]
      %v1977 = vld [vmem:[%s1970 + $0x18] sm:$0xf]
      %v1978 = vld [vmem:[%s1970 + $0x1c] sm:$0xf]
      %v1979 = vld [vmem:[%s1970 + $0x20] sm:$0xf]
      %v1980 = vld [vmem:[%s1970 + $0x24] sm:$0xf]
      %v1981 = vld [vmem:[%s1970 + $0x28] sm:$0xf]
      %v1982 = vld [vmem:[%s1970 + $0x2c] sm:$0xf]
      %v1983 = vld [vmem:[%s1970 + $0x30] sm:$0xf]
      %v1984 = vld [vmem:[%s1970 + $0x34] sm:$0xf]
      %v1985 = vld [vmem:[%s1970 + $0x38] sm:$0xf]
      %v1986 = vld [vmem:[%s1970 + $0x3c] sm:$0xf]
      %v2003 = vunpack.c.l.b16 %v1971
      %v2004 = vunpack.c.l.b16 %v1972
      %v2005 = vunpack.c.l.b16 %v1973
      %v2006 = vunpack.c.l.b16 %v1974
      %v2007 = vunpack.c.l.b16 %v1975
      %v2008 = vunpack.c.l.b16 %v1976
      %v2009 = vunpack.c.l.b16 %v1977
      %v2010 = vunpack.c.l.b16 %v1978
      %v2011 = vunpack.c.l.b16 %v1979
      %v2012 = vunpack.c.l.b16 %v1980
      %v2013 = vunpack.c.l.b16 %v1981
      %v2014 = vunpack.c.l.b16 %v1982
      %v2015 = vunpack.c.l.b16 %v1983
      %v2016 = vunpack.c.l.b16 %v1984
      %v2017 = vunpack.c.l.b16 %v1985
      %v2018 = vunpack.c.l.b16 %v1986
      %v2019 = vpack.c.b16 %v2004, %v2003
      %v2020 = vpack.c.b16 %v2006, %v2005
      %v2021 = vpack.c.b16 %v2008, %v2007
      %v2022 = vpack.c.b16 %v2010, %v2009
      %v2023 = vpack.c.b16 %v2012, %v2011
      %v2024 = vpack.c.b16 %v2014, %v2013
      %v2025 = vpack.c.b16 %v2016, %v2015
      %v2026 = vpack.c.b16 %v2018, %v2017
      %2035 = vmatprep.subr.bf16.mxu0 0
      %2036 = vmatpush1.bf16.msra.mxu0 %v2019
      %2037 = vmatprep.subr.bf16.mxu0 0
      %2038 = vmatpush1.bf16.msra.mxu0 %v2020
      %2039 = vmatprep.subr.bf16.mxu0 0
      %2040 = vmatpush1.bf16.msra.mxu0 %v2021
      %2041 = vmatprep.subr.bf16.mxu0 0
      %2042 = vmatpush1.bf16.msra.mxu0 %v2022
      %2043 = vmatprep.subr.bf16.mxu0 0
      %2044 = vmatpush1.bf16.msra.mxu0 %v2023
      %2045 = vmatprep.subr.bf16.mxu0 0
      %2046 = vmatpush1.bf16.msra.mxu0 %v2024
      %2047 = vmatprep.subr.bf16.mxu0 0
      %2048 = vmatpush1.bf16.msra.mxu0 %v2025
      %2049 = vmatprep.subr.bf16.mxu0 0
      %2050 = vmatpush1.bf16.msra.mxu0 %v2026
      %2051 = vmatprep.subr.bf16.mxu0 0
      %2052 = vmatpush1.bf16.msra.mxu0 0
      %2053 = vmatprep.subr.bf16.mxu0 0
      %2054 = vmatpush1.bf16.msra.mxu0 0
      %2055 = vmatprep.subr.bf16.mxu0 0
      %2056 = vmatpush1.bf16.msra.mxu0 0
      %2057 = vmatprep.subr.bf16.mxu0 0
      %2058 = vmatpush1.bf16.msra.mxu0 0
      %2059 = vmatprep.subr.bf16.mxu0 0
      %2060 = vmatpush1.bf16.msra.mxu0 0
      %2061 = vmatprep.subr.bf16.mxu0 0
      %2062 = vmatpush1.bf16.msra.mxu0 0
      %2063 = vmatprep.subr.bf16.mxu0 0
      %2064 = vmatpush1.bf16.msra.mxu0 0
      %2065 = vmatprep.subr.bf16.mxu0 0
      %2066 = vmatpush1.bf16.msra.mxu0 0
      %2067 = vmatprep.mubr.bf16.mxu0 0
      %2068 = vmatmul.mubr.bf16.gmra.mrb[0].mxu0 %v1966
      %v2069 = vpop.f32.mrb[0].mxu0
      %v2070 = vadd.f32 0.0, %v2069
      %v2071 = vpop.f32.mrb[0].mxu0
      %v2072 = vpop.f32.mrb[0].mxu0
      %v2073 = vadd.f32 0.0, %v2072
      %v2074 = vpop.f32.mrb[0].mxu0
      %2075 = vmatprep.mubr.bf16.mxu0 0
      %2076 = vmatmul.mubr.bf16.gmra.mrb[0].mxu0 %v1967
      %v2077 = vpop.f32.mrb[0].mxu0
      %v2078 = vadd.f32 0.0, %v2077
      %v2079 = vpop.f32.mrb[0].mxu0
      %v2080 = vpop.f32.mrb[0].mxu0
      %v2081 = vadd.f32 0.0, %v2080
      %v2082 = vpop.f32.mrb[0].mxu0
      %2083 = vmatprep.mubr.bf16.mxu0 0
      %2084 = vmatmul.mubr.bf16.gmra.mrb[0].mxu0 %v1968
      %v2085 = vpop.f32.mrb[0].mxu0
      %v2086 = vadd.f32 0.0, %v2085
      %v2087 = vpop.f32.mrb[0].mxu0
      %v2088 = vpop.f32.mrb[0].mxu0
      %v2089 = vadd.f32 0.0, %v2088
      %v2090 = vpop.f32.mrb[0].mxu0
      %2091 = vmatprep.mubr.bf16.mxu0 0
      %2092 = vmatmul.mubr.bf16.gmra.mrb[0].mxu0 %v1969
      %v2093 = vpop.f32.mrb[0].mxu0
      %v2094 = vadd.f32 0.0, %v2093
      %v2095 = vpop.f32.mrb[0].mxu0
      %v2096 = vpop.f32.mrb[0].mxu0
      %v2097 = vadd.f32 0.0, %v2096
      %v2098 = vpop.f32.mrb[0].mxu0
      %2099 = vdwg.mxu0
      %v2100 = vadd.f32 %v1942, %v2070
      %v2101 = vadd.f32 %v1943, %v2073
      %v2102 = vadd.f32 %v1944, %v2078
      %v2103 = vadd.f32 %v1945, %v2081
      %v2104 = vadd.f32 %v1946, %v2086
      %v2105 = vadd.f32 %v1947, %v2089
      %v2106 = vadd.f32 %v1948, %v2094
      %v2107 = vadd.f32 %v1949, %v2097
      %s2108 = scalar_lea.vmem %s1792, 2 [#allocation2]
      %v2109 = vld [vmem:[%s2108] ss:$2 sm:$0xff]
      %s2110 = scalar_lea.vmem %s1792, 50 [#allocation2]
      %v2111 = vld [vmem:[%s2110] ss:$2 sm:$0xff]
      %s2112 = scalar_lea.vmem %s1792, 98 [#allocation2]
      %v2113 = vld [vmem:[%s2112] ss:$2 sm:$0xff]
      %s2114 = scalar_lea.vmem %s1792, 146 [#allocation2]
      %v2115 = vld [vmem:[%s2114] ss:$2 sm:$0xff]
      %s2116 = scalar_lea.vmem %s1792, 194 [#allocation2]
      %v2117 = vld [vmem:[%s2116] ss:$2 sm:$0xff]
      %s2118 = scalar_lea.vmem %s1792, 242 [#allocation2]
      %v2119 = vld [vmem:[%s2118] ss:$2 sm:$0xff]
      %s2120 = scalar_lea.vmem %s1792, 290 [#allocation2]
      %v2121 = vld [vmem:[%s2120] ss:$2 sm:$0xff]
      %s2122 = scalar_lea.vmem %s1792, 338 [#allocation2]
      %v2123 = vld [vmem:[%s2122] ss:$2 sm:$0xff]
      %v2124 = vpack.c.bf16 %v2111, %v2109
      %v2125 = vpack.c.bf16 %v2115, %v2113
      %v2126 = vpack.c.bf16 %v2119, %v2117
      %v2127 = vpack.c.bf16 %v2123, %v2121
      %s2128 = scalar_lea.vmem %s4, 320
      %v2129 = vld [vmem:[%s2128] sm:$0xf]
      %v2130 = vld [vmem:[%s2128 + $0x4] sm:$0xf]
      %v2131 = vld [vmem:[%s2128 + $0x8] sm:$0xf]
      %v2132 = vld [vmem:[%s2128 + $0xc] sm:$0xf]
      %v2133 = vld [vmem:[%s2128 + $0x10] sm:$0xf]
      %v2134 = vld [vmem:[%s2128 + $0x14] sm:$0xf]
      %v2135 = vld [vmem:[%s2128 + $0x18] sm:$0xf]
      %v2136 = vld [vmem:[%s2128 + $0x1c] sm:$0xf]
      %v2137 = vld [vmem:[%s2128 + $0x20] sm:$0xf]
      %v2138 = vld [vmem:[%s2128 + $0x24] sm:$0xf]
      %v2139 = vld [vmem:[%s2128 + $0x28] sm:$0xf]
      %v2140 = vld [vmem:[%s2128 + $0x2c] sm:$0xf]
      %v2141 = vld [vmem:[%s2128 + $0x30] sm:$0xf]
      %v2142 = vld [vmem:[%s2128 + $0x34] sm:$0xf]
      %v2143 = vld [vmem:[%s2128 + $0x38] sm:$0xf]
      %v2144 = vld [vmem:[%s2128 + $0x3c] sm:$0xf]
      %v2161 = vunpack.c.l.b16 %v2129
      %v2162 = vunpack.c.l.b16 %v2130
      %v2163 = vunpack.c.l.b16 %v2131
      %v2164 = vunpack.c.l.b16 %v2132
      %v2165 = vunpack.c.l.b16 %v2133
      %v2166 = vunpack.c.l.b16 %v2134
      %v2167 = vunpack.c.l.b16 %v2135
      %v2168 = vunpack.c.l.b16 %v2136
      %v2169 = vunpack.c.l.b16 %v2137
      %v2170 = vunpack.c.l.b16 %v2138
      %v2171 = vunpack.c.l.b16 %v2139
      %v2172 = vunpack.c.l.b16 %v2140
      %v2173 = vunpack.c.l.b16 %v2141
      %v2174 = vunpack.c.l.b16 %v2142
      %v2175 = vunpack.c.l.b16 %v2143
      %v2176 = vunpack.c.l.b16 %v2144
      %v2177 = vpack.c.b16 %v2162, %v2161
      %v2178 = vpack.c.b16 %v2164, %v2163
      %v2179 = vpack.c.b16 %v2166, %v2165
      %v2180 = vpack.c.b16 %v2168, %v2167
      %v2181 = vpack.c.b16 %v2170, %v2169
      %v2182 = vpack.c.b16 %v2172, %v2171
      %v2183 = vpack.c.b16 %v2174, %v2173
      %v2184 = vpack.c.b16 %v2176, %v2175
      %2193 = vmatprep.subr.bf16.mxu0 0
      %2194 = vmatpush1.bf16.msra.mxu0 %v2177
      %2195 = vmatprep.subr.bf16.mxu0 0
      %2196 = vmatpush1.bf16.msra.mxu0 %v2178
      %2197 = vmatprep.subr.bf16.mxu0 0
      %2198 = vmatpush1.bf16.msra.mxu0 %v2179
      %2199 = vmatprep.subr.bf16.mxu0 0
      %2200 = vmatpush1.bf16.msra.mxu0 %v2180
      %2201 = vmatprep.subr.bf16.mxu0 0
      %2202 = vmatpush1.bf16.msra.mxu0 %v2181
      %2203 = vmatprep.subr.bf16.mxu0 0
      %2204 = vmatpush1.bf16.msra.mxu0 %v2182
      %2205 = vmatprep.subr.bf16.mxu0 0
      %2206 = vmatpush1.bf16.msra.mxu0 %v2183
      %2207 = vmatprep.subr.bf16.mxu0 0
      %2208 = vmatpush1.bf16.msra.mxu0 %v2184
      %2209 = vmatprep.subr.bf16.mxu0 0
      %2210 = vmatpush1.bf16.msra.mxu0 0
      %2211 = vmatprep.subr.bf16.mxu0 0
      %2212 = vmatpush1.bf16.msra.mxu0 0
      %2213 = vmatprep.subr.bf16.mxu0 0
      %2214 = vmatpush1.bf16.msra.mxu0 0
      %2215 = vmatprep.subr.bf16.mxu0 0
      %2216 = vmatpush1.bf16.msra.mxu0 0
      %2217 = vmatprep.subr.bf16.mxu0 0
      %2218 = vmatpush1.bf16.msra.mxu0 0
      %2219 = vmatprep.subr.bf16.mxu0 0
      %2220 = vmatpush1.bf16.msra.mxu0 0
      %2221 = vmatprep.subr.bf16.mxu0 0
      %2222 = vmatpush1.bf16.msra.mxu0 0
      %2223 = vmatprep.subr.bf16.mxu0 0
      %2224 = vmatpush1.bf16.msra.mxu0 0
      %2225 = vmatprep.mubr.bf16.mxu0 0
      %2226 = vmatmul.mubr.bf16.gmra.mrb[0].mxu0 %v2124
      %v2227 = vpop.f32.mrb[0].mxu0
      %v2228 = vadd.f32 0.0, %v2227
      %v2229 = vpop.f32.mrb[0].mxu0
      %v2230 = vpop.f32.mrb[0].mxu0
      %v2231 = vadd.f32 0.0, %v2230
      %v2232 = vpop.f32.mrb[0].mxu0
      %2233 = vmatprep.mubr.bf16.mxu0 0
      %2234 = vmatmul.mubr.bf16.gmra.mrb[0].mxu0 %v2125
      %v2235 = vpop.f32.mrb[0].mxu0
      %v2236 = vadd.f32 0.0, %v2235
      %v2237 = vpop.f32.mrb[0].mxu0
      %v2238 = vpop.f32.mrb[0].mxu0
      %v2239 = vadd.f32 0.0, %v2238
      %v2240 = vpop.f32.mrb[0].mxu0
      %2241 = vmatprep.mubr.bf16.mxu0 0
      %2242 = vmatmul.mubr.bf16.gmra.mrb[0].mxu0 %v2126
      %v2243 = vpop.f32.mrb[0].mxu0
      %v2244 = vadd.f32 0.0, %v2243
      %v2245 = vpop.f32.mrb[0].mxu0
      %v2246 = vpop.f32.mrb[0].mxu0
      %v2247 = vadd.f32 0.0, %v2246
      %v2248 = vpop.f32.mrb[0].mxu0
      %2249 = vmatprep.mubr.bf16.mxu0 0
      %2250 = vmatmul.mubr.bf16.gmra.mrb[0].mxu0 %v2127
      %v2251 = vpop.f32.mrb[0].mxu0
      %v2252 = vadd.f32 0.0, %v2251
      %v2253 = vpop.f32.mrb[0].mxu0
      %v2254 = vpop.f32.mrb[0].mxu0
      %v2255 = vadd.f32 0.0, %v2254
      %v2256 = vpop.f32.mrb[0].mxu0
      %2257 = vdwg.mxu0
      %v2258 = vadd.f32 %v2100, %v2228
      %v2259 = vadd.f32 %v2101, %v2231
      %v2260 = vadd.f32 %v2102, %v2236
      %v2261 = vadd.f32 %v2103, %v2239
      %v2262 = vadd.f32 %v2104, %v2244
      %v2263 = vadd.f32 %v2105, %v2247
      %v2264 = vadd.f32 %v2106, %v2252
      %v2265 = vadd.f32 %v2107, %v2255
      %s2266 = scalar_lea.vmem [#allocation2], 48
      %v2267 = vld [vmem:[%s2266] ss:$2 sm:$0xff]
      %s2268 = scalar_lea.vmem %s2266, 48 [#allocation2]
      %v2269 = vld [vmem:[%s2268] ss:$2 sm:$0xff]
      %s2270 = scalar_lea.vmem %s2266, 96 [#allocation2]
      %v2271 = vld [vmem:[%s2270] ss:$2 sm:$0xff]
      %s2272 = scalar_lea.vmem %s2266, 144 [#allocation2]
      %v2273 = vld [vmem:[%s2272] ss:$2 sm:$0xff]
      %s2274 = scalar_lea.vmem %s2266, 192 [#allocation2]
      %v2275 = vld [vmem:[%s2274] ss:$2 sm:$0xff]
      %s2276 = scalar_lea.vmem %s2266, 240 [#allocation2]
      %v2277 = vld [vmem:[%s2276] ss:$2 sm:$0xff]
      %s2278 = scalar_lea.vmem %s2266, 288 [#allocation2]
      %v2279 = vld [vmem:[%s2278] ss:$2 sm:$0xff]
      %s2280 = scalar_lea.vmem %s2266, 336 [#allocation2]
      %v2281 = vld [vmem:[%s2280] ss:$2 sm:$0xff]
      %v2282 = vpack.c.bf16 %v2269, %v2267
      %v2283 = vpack.c.bf16 %v2273, %v2271
      %v2284 = vpack.c.bf16 %v2277, %v2275
      %v2285 = vpack.c.bf16 %v2281, %v2279
      %s2286 = scalar_lea.vmem %s4, 384
      %v2287 = vld [vmem:[%s2286] sm:$0xf]
      %v2288 = vld [vmem:[%s2286 + $0x4] sm:$0xf]
      %v2289 = vld [vmem:[%s2286 + $0x8] sm:$0xf]
      %v2290 = vld [vmem:[%s2286 + $0xc] sm:$0xf]
      %v2291 = vld [vmem:[%s2286 + $0x10] sm:$0xf]
      %v2292 = vld [vmem:[%s2286 + $0x14] sm:$0xf]
      %v2293 = vld [vmem:[%s2286 + $0x18] sm:$0xf]
      %v2294 = vld [vmem:[%s2286 + $0x1c] sm:$0xf]
      %v2295 = vld [vmem:[%s2286 + $0x20] sm:$0xf]
      %v2296 = vld [vmem:[%s2286 + $0x24] sm:$0xf]
      %v2297 = vld [vmem:[%s2286 + $0x28] sm:$0xf]
      %v2298 = vld [vmem:[%s2286 + $0x2c] sm:$0xf]
      %v2299 = vld [vmem:[%s2286 + $0x30] sm:$0xf]
      %v2300 = vld [vmem:[%s2286 + $0x34] sm:$0xf]
      %v2301 = vld [vmem:[%s2286 + $0x38] sm:$0xf]
      %v2302 = vld [vmem:[%s2286 + $0x3c] sm:$0xf]
      %v2319 = vunpack.c.l.b16 %v2287
      %v2320 = vunpack.c.l.b16 %v2288
      %v2321 = vunpack.c.l.b16 %v2289
      %v2322 = vunpack.c.l.b16 %v2290
      %v2323 = vunpack.c.l.b16 %v2291
      %v2324 = vunpack.c.l.b16 %v2292
      %v2325 = vunpack.c.l.b16 %v2293
      %v2326 = vunpack.c.l.b16 %v2294
      %v2327 = vunpack.c.l.b16 %v2295
      %v2328 = vunpack.c.l.b16 %v2296
      %v2329 = vunpack.c.l.b16 %v2297
      %v2330 = vunpack.c.l.b16 %v2298
      %v2331 = vunpack.c.l.b16 %v2299
      %v2332 = vunpack.c.l.b16 %v2300
      %v2333 = vunpack.c.l.b16 %v2301
      %v2334 = vunpack.c.l.b16 %v2302
      %v2335 = vpack.c.b16 %v2320, %v2319
      %v2336 = vpack.c.b16 %v2322, %v2321
      %v2337 = vpack.c.b16 %v2324, %v2323
      %v2338 = vpack.c.b16 %v2326, %v2325
      %v2339 = vpack.c.b16 %v2328, %v2327
      %v2340 = vpack.c.b16 %v2330, %v2329
      %v2341 = vpack.c.b16 %v2332, %v2331
      %v2342 = vpack.c.b16 %v2334, %v2333
      %2351 = vmatprep.subr.bf16.mxu0 0
      %2352 = vmatpush1.bf16.msra.mxu0 %v2335
      %2353 = vmatprep.subr.bf16.mxu0 0
      %2354 = vmatpush1.bf16.msra.mxu0 %v2336
      %2355 = vmatprep.subr.bf16.mxu0 0
      %2356 = vmatpush1.bf16.msra.mxu0 %v2337
      %2357 = vmatprep.subr.bf16.mxu0 0
      %2358 = vmatpush1.bf16.msra.mxu0 %v2338
      %2359 = vmatprep.subr.bf16.mxu0 0
      %2360 = vmatpush1.bf16.msra.mxu0 %v2339
      %2361 = vmatprep.subr.bf16.mxu0 0
      %2362 = vmatpush1.bf16.msra.mxu0 %v2340
      %2363 = vmatprep.subr.bf16.mxu0 0
      %2364 = vmatpush1.bf16.msra.mxu0 %v2341
      %2365 = vmatprep.subr.bf16.mxu0 0
      %2366 = vmatpush1.bf16.msra.mxu0 %v2342
      %2367 = vmatprep.subr.bf16.mxu0 0
      %2368 = vmatpush1.bf16.msra.mxu0 0
      %2369 = vmatprep.subr.bf16.mxu0 0
      %2370 = vmatpush1.bf16.msra.mxu0 0
      %2371 = vmatprep.subr.bf16.mxu0 0
      %2372 = vmatpush1.bf16.msra.mxu0 0
      %2373 = vmatprep.subr.bf16.mxu0 0
      %2374 = vmatpush1.bf16.msra.mxu0 0
      %2375 = vmatprep.subr.bf16.mxu0 0
      %2376 = vmatpush1.bf16.msra.mxu0 0
      %2377 = vmatprep.subr.bf16.mxu0 0
      %2378 = vmatpush1.bf16.msra.mxu0 0
      %2379 = vmatprep.subr.bf16.mxu0 0
      %2380 = vmatpush1.bf16.msra.mxu0 0
      %2381 = vmatprep.subr.bf16.mxu0 0
      %2382 = vmatpush1.bf16.msra.mxu0 0
      %2383 = vmatprep.mubr.bf16.mxu0 0
      %2384 = vmatmul.mubr.bf16.gmra.mrb[0].mxu0 %v2282
      %v2385 = vpop.f32.mrb[0].mxu0
      %v2386 = vadd.f32 0.0, %v2385
      %v2387 = vpop.f32.mrb[0].mxu0
      %v2388 = vpop.f32.mrb[0].mxu0
      %v2389 = vadd.f32 0.0, %v2388
      %v2390 = vpop.f32.mrb[0].mxu0
      %2391 = vmatprep.mubr.bf16.mxu0 0
      %2392 = vmatmul.mubr.bf16.gmra.mrb[0].mxu0 %v2283
      %v2393 = vpop.f32.mrb[0].mxu0
      %v2394 = vadd.f32 0.0, %v2393
      %v2395 = vpop.f32.mrb[0].mxu0
      %v2396 = vpop.f32.mrb[0].mxu0
      %v2397 = vadd.f32 0.0, %v2396
      %v2398 = vpop.f32.mrb[0].mxu0
      %2399 = vmatprep.mubr.bf16.mxu0 0
      %2400 = vmatmul.mubr.bf16.gmra.mrb[0].mxu0 %v2284
      %v2401 = vpop.f32.mrb[0].mxu0
      %v2402 = vadd.f32 0.0, %v2401
      %v2403 = vpop.f32.mrb[0].mxu0
      %v2404 = vpop.f32.mrb[0].mxu0
      %v2405 = vadd.f32 0.0, %v2404
      %v2406 = vpop.f32.mrb[0].mxu0
      %2407 = vmatprep.mubr.bf16.mxu0 0
      %2408 = vmatmul.mubr.bf16.gmra.mrb[0].mxu0 %v2285
      %v2409 = vpop.f32.mrb[0].mxu0
      %v2410 = vadd.f32 0.0, %v2409
      %v2411 = vpop.f32.mrb[0].mxu0
      %v2412 = vpop.f32.mrb[0].mxu0
      %v2413 = vadd.f32 0.0, %v2412
      %v2414 = vpop.f32.mrb[0].mxu0
      %2415 = vdwg.mxu0
      %v2416 = vadd.f32 %v2258, %v2386
      %v2417 = vadd.f32 %v2259, %v2389
      %v2418 = vadd.f32 %v2260, %v2394
      %v2419 = vadd.f32 %v2261, %v2397
      %v2420 = vadd.f32 %v2262, %v2402
      %v2421 = vadd.f32 %v2263, %v2405
      %v2422 = vadd.f32 %v2264, %v2410
      %v2423 = vadd.f32 %v2265, %v2413
      %s2424 = scalar_lea.vmem %s2266, 1 [#allocation2]
      %v2425 = vld [vmem:[%s2424] ss:$2 sm:$0xff]
      %s2426 = scalar_lea.vmem %s2266, 49 [#allocation2]
      %v2427 = vld [vmem:[%s2426] ss:$2 sm:$0xff]
      %s2428 = scalar_lea.vmem %s2266, 97 [#allocation2]
      %v2429 = vld [vmem:[%s2428] ss:$2 sm:$0xff]
      %s2430 = scalar_lea.vmem %s2266, 145 [#allocation2]
      %v2431 = vld [vmem:[%s2430] ss:$2 sm:$0xff]
      %s2432 = scalar_lea.vmem %s2266, 193 [#allocation2]
      %v2433 = vld [vmem:[%s2432] ss:$2 sm:$0xff]
      %s2434 = scalar_lea.vmem %s2266, 241 [#allocation2]
      %v2435 = vld [vmem:[%s2434] ss:$2 sm:$0xff]
      %s2436 = scalar_lea.vmem %s2266, 289 [#allocation2]
      %v2437 = vld [vmem:[%s2436] ss:$2 sm:$0xff]
      %s2438 = scalar_lea.vmem %s2266, 337 [#allocation2]
      %v2439 = vld [vmem:[%s2438] ss:$2 sm:$0xff]
      %v2440 = vpack.c.bf16 %v2427, %v2425
      %v2441 = vpack.c.bf16 %v2431, %v2429
      %v2442 = vpack.c.bf16 %v2435, %v2433
      %v2443 = vpack.c.bf16 %v2439, %v2437
      %s2444 = scalar_lea.vmem %s4, 448
      %v2445 = vld [vmem:[%s2444] sm:$0xf]
      %v2446 = vld [vmem:[%s2444 + $0x4] sm:$0xf]
      %v2447 = vld [vmem:[%s2444 + $0x8] sm:$0xf]
      %v2448 = vld [vmem:[%s2444 + $0xc] sm:$0xf]
      %v2449 = vld [vmem:[%s2444 + $0x10] sm:$0xf]
      %v2450 = vld [vmem:[%s2444 + $0x14] sm:$0xf]
      %v2451 = vld [vmem:[%s2444 + $0x18] sm:$0xf]
      %v2452 = vld [vmem:[%s2444 + $0x1c] sm:$0xf]
      %v2453 = vld [vmem:[%s2444 + $0x20] sm:$0xf]
      %v2454 = vld [vmem:[%s2444 + $0x24] sm:$0xf]
      %v2455 = vld [vmem:[%s2444 + $0x28] sm:$0xf]
      %v2456 = vld [vmem:[%s2444 + $0x2c] sm:$0xf]
      %v2457 = vld [vmem:[%s2444 + $0x30] sm:$0xf]
      %v2458 = vld [vmem:[%s2444 + $0x34] sm:$0xf]
      %v2459 = vld [vmem:[%s2444 + $0x38] sm:$0xf]
      %v2460 = vld [vmem:[%s2444 + $0x3c] sm:$0xf]
      %v2477 = vunpack.c.l.b16 %v2445
      %v2478 = vunpack.c.l.b16 %v2446
      %v2479 = vunpack.c.l.b16 %v2447
      %v2480 = vunpack.c.l.b16 %v2448
      %v2481 = vunpack.c.l.b16 %v2449
      %v2482 = vunpack.c.l.b16 %v2450
      %v2483 = vunpack.c.l.b16 %v2451
      %v2484 = vunpack.c.l.b16 %v2452
      %v2485 = vunpack.c.l.b16 %v2453
      %v2486 = vunpack.c.l.b16 %v2454
      %v2487 = vunpack.c.l.b16 %v2455
      %v2488 = vunpack.c.l.b16 %v2456
      %v2489 = vunpack.c.l.b16 %v2457
      %v2490 = vunpack.c.l.b16 %v2458
      %v2491 = vunpack.c.l.b16 %v2459
      %v2492 = vunpack.c.l.b16 %v2460
      %v2493 = vpack.c.b16 %v2478, %v2477
      %v2494 = vpack.c.b16 %v2480, %v2479
      %v2495 = vpack.c.b16 %v2482, %v2481
      %v2496 = vpack.c.b16 %v2484, %v2483
      %v2497 = vpack.c.b16 %v2486, %v2485
      %v2498 = vpack.c.b16 %v2488, %v2487
      %v2499 = vpack.c.b16 %v2490, %v2489
      %v2500 = vpack.c.b16 %v2492, %v2491
      %2509 = vmatprep.subr.bf16.mxu0 0
      %2510 = vmatpush1.bf16.msra.mxu0 %v2493
      %2511 = vmatprep.subr.bf16.mxu0 0
      %2512 = vmatpush1.bf16.msra.mxu0 %v2494
      %2513 = vmatprep.subr.bf16.mxu0 0
      %2514 = vmatpush1.bf16.msra.mxu0 %v2495
      %2515 = vmatprep.subr.bf16.mxu0 0
      %2516 = vmatpush1.bf16.msra.mxu0 %v2496
      %2517 = vmatprep.subr.bf16.mxu0 0
      %2518 = vmatpush1.bf16.msra.mxu0 %v2497
      %2519 = vmatprep.subr.bf16.mxu0 0
      %2520 = vmatpush1.bf16.msra.mxu0 %v2498
      %2521 = vmatprep.subr.bf16.mxu0 0
      %2522 = vmatpush1.bf16.msra.mxu0 %v2499
      %2523 = vmatprep.subr.bf16.mxu0 0
      %2524 = vmatpush1.bf16.msra.mxu0 %v2500
      %2525 = vmatprep.subr.bf16.mxu0 0
      %2526 = vmatpush1.bf16.msra.mxu0 0
      %2527 = vmatprep.subr.bf16.mxu0 0
      %2528 = vmatpush1.bf16.msra.mxu0 0
      %2529 = vmatprep.subr.bf16.mxu0 0
      %2530 = vmatpush1.bf16.msra.mxu0 0
      %2531 = vmatprep.subr.bf16.mxu0 0
      %2532 = vmatpush1.bf16.msra.mxu0 0
      %2533 = vmatprep.subr.bf16.mxu0 0
      %2534 = vmatpush1.bf16.msra.mxu0 0
      %2535 = vmatprep.subr.bf16.mxu0 0
      %2536 = vmatpush1.bf16.msra.mxu0 0
      %2537 = vmatprep.subr.bf16.mxu0 0
      %2538 = vmatpush1.bf16.msra.mxu0 0
      %2539 = vmatprep.subr.bf16.mxu0 0
      %2540 = vmatpush1.bf16.msra.mxu0 0
      %2541 = vmatprep.mubr.bf16.mxu0 0
      %2542 = vmatmul.mubr.bf16.gmra.mrb[0].mxu0 %v2440
      %v2543 = vpop.f32.mrb[0].mxu0
      %v2544 = vadd.f32 0.0, %v2543
      %v2545 = vpop.f32.mrb[0].mxu0
      %v2546 = vpop.f32.mrb[0].mxu0
      %v2547 = vadd.f32 0.0, %v2546
      %v2548 = vpop.f32.mrb[0].mxu0
      %2549 = vmatprep.mubr.bf16.mxu0 0
      %2550 = vmatmul.mubr.bf16.gmra.mrb[0].mxu0 %v2441
      %v2551 = vpop.f32.mrb[0].mxu0
      %v2552 = vadd.f32 0.0, %v2551
      %v2553 = vpop.f32.mrb[0].mxu0
      %v2554 = vpop.f32.mrb[0].mxu0
      %v2555 = vadd.f32 0.0, %v2554
      %v2556 = vpop.f32.mrb[0].mxu0
      %2557 = vmatprep.mubr.bf16.mxu0 0
      %2558 = vmatmul.mubr.bf16.gmra.mrb[0].mxu0 %v2442
      %v2559 = vpop.f32.mrb[0].mxu0
      %v2560 = vadd.f32 0.0, %v2559
      %v2561 = vpop.f32.mrb[0].mxu0
      %v2562 = vpop.f32.mrb[0].mxu0
      %v2563 = vadd.f32 0.0, %v2562
      %v2564 = vpop.f32.mrb[0].mxu0
      %2565 = vmatprep.mubr.bf16.mxu0 0
      %2566 = vmatmul.mubr.bf16.gmra.mrb[0].mxu0 %v2443
      %v2567 = vpop.f32.mrb[0].mxu0
      %v2568 = vadd.f32 0.0, %v2567
      %v2569 = vpop.f32.mrb[0].mxu0
      %v2570 = vpop.f32.mrb[0].mxu0
      %v2571 = vadd.f32 0.0, %v2570
      %v2572 = vpop.f32.mrb[0].mxu0
      %2573 = vdwg.mxu0
      %v2574 = vadd.f32 %v2416, %v2544
      %v2575 = vadd.f32 %v2417, %v2547
      %v2576 = vadd.f32 %v2418, %v2552
      %v2577 = vadd.f32 %v2419, %v2555
      %v2578 = vadd.f32 %v2420, %v2560
      %v2579 = vadd.f32 %v2421, %v2563
      %v2580 = vadd.f32 %v2422, %v2568
      %v2581 = vadd.f32 %v2423, %v2571
      %s2582 = scalar_lea.vmem %s2266, 2 [#allocation2]
      %v2583 = vld [vmem:[%s2582] ss:$2 sm:$0xff]
      %s2584 = scalar_lea.vmem %s2266, 50 [#allocation2]
      %v2585 = vld [vmem:[%s2584] ss:$2 sm:$0xff]
      %s2586 = scalar_lea.vmem %s2266, 98 [#allocation2]
      %v2587 = vld [vmem:[%s2586] ss:$2 sm:$0xff]
      %s2588 = scalar_lea.vmem %s2266, 146 [#allocation2]
      %v2589 = vld [vmem:[%s2588] ss:$2 sm:$0xff]
      %s2590 = scalar_lea.vmem %s2266, 194 [#allocation2]
      %v2591 = vld [vmem:[%s2590] ss:$2 sm:$0xff]
      %s2592 = scalar_lea.vmem %s2266, 242 [#allocation2]
      %v2593 = vld [vmem:[%s2592] ss:$2 sm:$0xff]
      %s2594 = scalar_lea.vmem %s2266, 290 [#allocation2]
      %v2595 = vld [vmem:[%s2594] ss:$2 sm:$0xff]
      %s2596 = scalar_lea.vmem %s2266, 338 [#allocation2]
      %v2597 = vld [vmem:[%s2596] ss:$2 sm:$0xff]
      %v2598 = vpack.c.bf16 %v2585, %v2583
      %v2599 = vpack.c.bf16 %v2589, %v2587
      %v2600 = vpack.c.bf16 %v2593, %v2591
      %v2601 = vpack.c.bf16 %v2597, %v2595
      %s2602 = scalar_lea.vmem %s4, 512
      %v2603 = vld [vmem:[%s2602] sm:$0xf]
      %v2604 = vld [vmem:[%s2602 + $0x4] sm:$0xf]
      %v2605 = vld [vmem:[%s2602 + $0x8] sm:$0xf]
      %v2606 = vld [vmem:[%s2602 + $0xc] sm:$0xf]
      %v2607 = vld [vmem:[%s2602 + $0x10] sm:$0xf]
      %v2608 = vld [vmem:[%s2602 + $0x14] sm:$0xf]
      %v2609 = vld [vmem:[%s2602 + $0x18] sm:$0xf]
      %v2610 = vld [vmem:[%s2602 + $0x1c] sm:$0xf]
      %v2611 = vld [vmem:[%s2602 + $0x20] sm:$0xf]
      %v2612 = vld [vmem:[%s2602 + $0x24] sm:$0xf]
      %v2613 = vld [vmem:[%s2602 + $0x28] sm:$0xf]
      %v2614 = vld [vmem:[%s2602 + $0x2c] sm:$0xf]
      %v2615 = vld [vmem:[%s2602 + $0x30] sm:$0xf]
      %v2616 = vld [vmem:[%s2602 + $0x34] sm:$0xf]
      %v2617 = vld [vmem:[%s2602 + $0x38] sm:$0xf]
      %v2618 = vld [vmem:[%s2602 + $0x3c] sm:$0xf]
      %v2635 = vunpack.c.l.b16 %v2603
      %v2636 = vunpack.c.l.b16 %v2604
      %v2637 = vunpack.c.l.b16 %v2605
      %v2638 = vunpack.c.l.b16 %v2606
      %v2639 = vunpack.c.l.b16 %v2607
      %v2640 = vunpack.c.l.b16 %v2608
      %v2641 = vunpack.c.l.b16 %v2609
      %v2642 = vunpack.c.l.b16 %v2610
      %v2643 = vunpack.c.l.b16 %v2611
      %v2644 = vunpack.c.l.b16 %v2612
      %v2645 = vunpack.c.l.b16 %v2613
      %v2646 = vunpack.c.l.b16 %v2614
      %v2647 = vunpack.c.l.b16 %v2615
      %v2648 = vunpack.c.l.b16 %v2616
      %v2649 = vunpack.c.l.b16 %v2617
      %v2650 = vunpack.c.l.b16 %v2618
      %v2651 = vpack.c.b16 %v2636, %v2635
      %v2652 = vpack.c.b16 %v2638, %v2637
      %v2653 = vpack.c.b16 %v2640, %v2639
      %v2654 = vpack.c.b16 %v2642, %v2641
      %v2655 = vpack.c.b16 %v2644, %v2643
      %v2656 = vpack.c.b16 %v2646, %v2645
      %v2657 = vpack.c.b16 %v2648, %v2647
      %v2658 = vpack.c.b16 %v2650, %v2649
      %2667 = vmatprep.subr.bf16.mxu0 0
      %2668 = vmatpush1.bf16.msra.mxu0 %v2651
      %2669 = vmatprep.subr.bf16.mxu0 0
      %2670 = vmatpush1.bf16.msra.mxu0 %v2652
      %2671 = vmatprep.subr.bf16.mxu0 0
      %2672 = vmatpush1.bf16.msra.mxu0 %v2653
      %2673 = vmatprep.subr.bf16.mxu0 0
      %2674 = vmatpush1.bf16.msra.mxu0 %v2654
      %2675 = vmatprep.subr.bf16.mxu0 0
      %2676 = vmatpush1.bf16.msra.mxu0 %v2655
      %2677 = vmatprep.subr.bf16.mxu0 0
      %2678 = vmatpush1.bf16.msra.mxu0 %v2656
      %2679 = vmatprep.subr.bf16.mxu0 0
      %2680 = vmatpush1.bf16.msra.mxu0 %v2657
      %2681 = vmatprep.subr.bf16.mxu0 0
      %2682 = vmatpush1.bf16.msra.mxu0 %v2658
      %2683 = vmatprep.subr.bf16.mxu0 0
      %2684 = vmatpush1.bf16.msra.mxu0 0
      %2685 = vmatprep.subr.bf16.mxu0 0
      %2686 = vmatpush1.bf16.msra.mxu0 0
      %2687 = vmatprep.subr.bf16.mxu0 0
      %2688 = vmatpush1.bf16.msra.mxu0 0
      %2689 = vmatprep.subr.bf16.mxu0 0
      %2690 = vmatpush1.bf16.msra.mxu0 0
      %2691 = vmatprep.subr.bf16.mxu0 0
      %2692 = vmatpush1.bf16.msra.mxu0 0
      %2693 = vmatprep.subr.bf16.mxu0 0
      %2694 = vmatpush1.bf16.msra.mxu0 0
      %2695 = vmatprep.subr.bf16.mxu0 0
      %2696 = vmatpush1.bf16.msra.mxu0 0
      %2697 = vmatprep.subr.bf16.mxu0 0
      %2698 = vmatpush1.bf16.msra.mxu0 0
      %2699 = vmatprep.mubr.bf16.mxu0 0
      %2700 = vmatmul.mubr.bf16.gmra.mrb[0].mxu0 %v2598
      %v2701 = vpop.f32.mrb[0].mxu0
      %v2702 = vadd.f32 0.0, %v2701
      %v2703 = vpop.f32.mrb[0].mxu0
      %v2704 = vpop.f32.mrb[0].mxu0
      %v2705 = vadd.f32 0.0, %v2704
      %v2706 = vpop.f32.mrb[0].mxu0
      %2707 = vmatprep.mubr.bf16.mxu0 0
      %2708 = vmatmul.mubr.bf16.gmra.mrb[0].mxu0 %v2599
      %v2709 = vpop.f32.mrb[0].mxu0
      %v2710 = vadd.f32 0.0, %v2709
      %v2711 = vpop.f32.mrb[0].mxu0
      %v2712 = vpop.f32.mrb[0].mxu0
      %v2713 = vadd.f32 0.0, %v2712
      %v2714 = vpop.f32.mrb[0].mxu0
      %2715 = vmatprep.mubr.bf16.mxu0 0
      %2716 = vmatmul.mubr.bf16.gmra.mrb[0].mxu0 %v2600
      %v2717 = vpop.f32.mrb[0].mxu0
      %v2718 = vadd.f32 0.0, %v2717
      %v2719 = vpop.f32.mrb[0].mxu0
      %v2720 = vpop.f32.mrb[0].mxu0
      %v2721 = vadd.f32 0.0, %v2720
      %v2722 = vpop.f32.mrb[0].mxu0
      %2723 = vmatprep.mubr.bf16.mxu0 0
      %2724 = vmatmul.mubr.bf16.gmra.mrb[0].mxu0 %v2601
      %v2725 = vpop.f32.mrb[0].mxu0
      %v2726 = vadd.f32 0.0, %v2725
      %v2727 = vpop.f32.mrb[0].mxu0
      %v2728 = vpop.f32.mrb[0].mxu0
      %v2729 = vadd.f32 0.0, %v2728
      %v2730 = vpop.f32.mrb[0].mxu0
      %2731 = vdwg.mxu0
      %v2732 = vadd.f32 %v2574, %v2702
      %v2733 = vadd.f32 %v2575, %v2705
      %v2734 = vadd.f32 %v2576, %v2710
      %v2735 = vadd.f32 %v2577, %v2713
      %v2736 = vadd.f32 %v2578, %v2718
      %v2737 = vadd.f32 %v2579, %v2721
      %v2738 = vadd.f32 %v2580, %v2726
      %v2739 = vadd.f32 %v2581, %v2729
      %v2740 = vld [vmem:[%s5] sm:$0x1]
      %v2742 = vlaneseq
      %v2743 = vshrl.u32 %v2742, 7
      %v2744 = vsub.s32 0, %v2743
      %v2745 = vrot.slane %v2740, %v2744
      %v2747 = vadd.f32 %v2732, %v2745
      %v2748 = vadd.f32 %v2733, %v2745
      %v2749 = vadd.f32 %v2734, %v2745
      %v2750 = vadd.f32 %v2735, %v2745
      %v2751 = vadd.f32 %v2736, %v2745
      %v2752 = vadd.f32 %v2737, %v2745
      %v2753 = vadd.f32 %v2738, %v2745
      %v2754 = vadd.f32 %v2739, %v2745
      %v2755 = vmax.f32 %v2747, 0.0
      %v2756 = vmax.f32 %v2748, 0.0
      %v2757 = vmax.f32 %v2749, 0.0
      %v2758 = vmax.f32 %v2750, 0.0
      %v2759 = vmax.f32 %v2751, 0.0
      %v2760 = vmax.f32 %v2752, 0.0
      %v2761 = vmax.f32 %v2753, 0.0
      %v2762 = vmax.f32 %v2754, 0.0
      %v2763 = vpack.c.bf16 %v2756, %v2755
      %v2764 = vpack.c.bf16 %v2758, %v2757
      %v2765 = vpack.c.bf16 %v2760, %v2759
      %v2766 = vpack.c.bf16 %v2762, %v2761
      %v2767 = vld [vmem:[%s6] sm:$0xf]
      %v2768 = vld [vmem:[%s6 + $0x4] sm:$0xf]
      %v2769 = vld [vmem:[%s6 + $0x8] sm:$0xf]
      %v2770 = vld [vmem:[%s6 + $0xc] sm:$0xf]
      %v2771 = vld [vmem:[%s6 + $0x10] sm:$0xf]
      %v2772 = vld [vmem:[%s6 + $0x14] sm:$0xf]
      %v2773 = vld [vmem:[%s6 + $0x18] sm:$0xf]
      %v2774 = vld [vmem:[%s6 + $0x1c] sm:$0xf]
      %v2775 = vld [vmem:[%s6 + $0x20] sm:$0xf]
      %v2776 = vld [vmem:[%s6 + $0x24] sm:$0xf]
      %v2777 = vld [vmem:[%s6 + $0x28] sm:$0xf]
      %v2778 = vld [vmem:[%s6 + $0x2c] sm:$0xf]
      %v2779 = vld [vmem:[%s6 + $0x30] sm:$0xf]
      %v2780 = vld [vmem:[%s6 + $0x34] sm:$0xf]
      %v2781 = vld [vmem:[%s6 + $0x38] sm:$0xf]
      %v2782 = vld [vmem:[%s6 + $0x3c] sm:$0xf]
      %v2783 = vld [vmem:[%s7] sm:$0x1]
      %v2785 = vlaneseq
      %v2786 = vshrl.u32 %v2785, 7
      %v2787 = vsub.s32 0, %v2786
      %v2788 = vrot.slane %v2783, %v2787
      %v2806 = vunpack.c.l.b16 %v2767
      %v2807 = vunpack.c.l.b16 %v2768
      %v2808 = vunpack.c.l.b16 %v2769
      %v2809 = vunpack.c.l.b16 %v2770
      %v2810 = vunpack.c.l.b16 %v2771
      %v2811 = vunpack.c.l.b16 %v2772
      %v2812 = vunpack.c.l.b16 %v2773
      %v2813 = vunpack.c.l.b16 %v2774
      %v2814 = vunpack.c.l.b16 %v2775
      %v2815 = vunpack.c.l.b16 %v2776
      %v2816 = vunpack.c.l.b16 %v2777
      %v2817 = vunpack.c.l.b16 %v2778
      %v2818 = vunpack.c.l.b16 %v2779
      %v2819 = vunpack.c.l.b16 %v2780
      %v2820 = vunpack.c.l.b16 %v2781
      %v2821 = vunpack.c.l.b16 %v2782
      %v2822 = vpack.c.b16 %v2807, %v2806
      %v2823 = vpack.c.b16 %v2809, %v2808
      %v2824 = vpack.c.b16 %v2811, %v2810
      %v2825 = vpack.c.b16 %v2813, %v2812
      %v2826 = vpack.c.b16 %v2815, %v2814
      %v2827 = vpack.c.b16 %v2817, %v2816
      %v2828 = vpack.c.b16 %v2819, %v2818
      %v2829 = vpack.c.b16 %v2821, %v2820
      %2838 = vmatprep.subr.bf16.mxu0 0
      %2839 = vmatpush1.bf16.msra.mxu0 %v2822
      %2840 = vmatprep.subr.bf16.mxu0 0
      %2841 = vmatpush1.bf16.msra.mxu0 %v2823
      %2842 = vmatprep.subr.bf16.mxu0 0
      %2843 = vmatpush1.bf16.msra.mxu0 %v2824
      %2844 = vmatprep.subr.bf16.mxu0 0
      %2845 = vmatpush1.bf16.msra.mxu0 %v2825
      %2846 = vmatprep.subr.bf16.mxu0 0
      %2847 = vmatpush1.bf16.msra.mxu0 %v2826
      %2848 = vmatprep.subr.bf16.mxu0 0
      %2849 = vmatpush1.bf16.msra.mxu0 %v2827
      %2850 = vmatprep.subr.bf16.mxu0 0
      %2851 = vmatpush1.bf16.msra.mxu0 %v2828
      %2852 = vmatprep.subr.bf16.mxu0 0
      %2853 = vmatpush1.bf16.msra.mxu0 %v2829
      %2854 = vmatprep.subr.bf16.mxu0 0
      %2855 = vmatpush1.bf16.msra.mxu0 0
      %2856 = vmatprep.subr.bf16.mxu0 0
      %2857 = vmatpush1.bf16.msra.mxu0 0
      %2858 = vmatprep.subr.bf16.mxu0 0
      %2859 = vmatpush1.bf16.msra.mxu0 0
      %2860 = vmatprep.subr.bf16.mxu0 0
      %2861 = vmatpush1.bf16.msra.mxu0 0
      %2862 = vmatprep.subr.bf16.mxu0 0
      %2863 = vmatpush1.bf16.msra.mxu0 0
      %2864 = vmatprep.subr.bf16.mxu0 0
      %2865 = vmatpush1.bf16.msra.mxu0 0
      %2866 = vmatprep.subr.bf16.mxu0 0
      %2867 = vmatpush1.bf16.msra.mxu0 0
      %2868 = vmatprep.subr.bf16.mxu0 0
      %2869 = vmatpush1.bf16.msra.mxu0 0
      %2870 = vmatprep.mubr.bf16.mxu0 0
      %2871 = vmatmul.mubr.bf16.gmra.mrb[0].mxu0 %v2763
      %v2872 = vpop.f32.mrb[0].mxu0
      %v2873 = vadd.f32 %v2788, %v2872
      %v2874 = vpop.f32.mrb[0].mxu0
      %v2875 = vpop.f32.mrb[0].mxu0
      %v2876 = vadd.f32 %v2788, %v2875
      %v2877 = vpop.f32.mrb[0].mxu0
      %2878 = vmatprep.mubr.bf16.mxu0 0
      %2879 = vmatmul.mubr.bf16.gmra.mrb[0].mxu0 %v2764
      %v2880 = vpop.f32.mrb[0].mxu0
      %v2881 = vadd.f32 %v2788, %v2880
      %v2882 = vpop.f32.mrb[0].mxu0
      %v2883 = vpop.f32.mrb[0].mxu0
      %v2884 = vadd.f32 %v2788, %v2883
      %v2885 = vpop.f32.mrb[0].mxu0
      %2886 = vmatprep.mubr.bf16.mxu0 0
      %2887 = vmatmul.mubr.bf16.gmra.mrb[0].mxu0 %v2765
      %v2888 = vpop.f32.mrb[0].mxu0
      %v2889 = vadd.f32 %v2788, %v2888
      %v2890 = vpop.f32.mrb[0].mxu0
      %v2891 = vpop.f32.mrb[0].mxu0
      %v2892 = vadd.f32 %v2788, %v2891
      %v2893 = vpop.f32.mrb[0].mxu0
      %2894 = vmatprep.mubr.bf16.mxu0 0
      %2895 = vmatmul.mubr.bf16.gmra.mrb[0].mxu0 %v2766
      %v2896 = vpop.f32.mrb[0].mxu0
      %v2897 = vadd.f32 %v2788, %v2896
      %v2898 = vpop.f32.mrb[0].mxu0
      %v2899 = vpop.f32.mrb[0].mxu0
      %v2900 = vadd.f32 %v2788, %v2899
      %v2901 = vpop.f32.mrb[0].mxu0
      %2902 = vdwg.mxu0
      %2903 = vst [vmem:[%s305] sm:$0xff] %v2873
      %2904 = vst [vmem:[%s305 + $0x8] sm:$0xff] %v2876
      %2905 = vst [vmem:[%s305 + $0x10] sm:$0xff] %v2881
      %2906 = vst [vmem:[%s305 + $0x18] sm:$0xff] %v2884
      %2907 = vst [vmem:[%s305 + $0x20] sm:$0xff] %v2889
      %2908 = vst [vmem:[%s305 + $0x28] sm:$0xff] %v2892
      %2909 = vst [vmem:[%s305 + $0x30] sm:$0xff] %v2897
      %2910 = vst [vmem:[%s305 + $0x38] sm:$0xff] %v2900
      %p2911 = scmp.lt.s32.totalorder %s19, 1
      %s2912 = scalar_select %p2911, %s19, 1
      %s2913 = smul.addr %s2912, 8
      %s2914 = smul.addr %s2913, 8
      %s2915 = scalar_lea.vmem %s8, %s2914
      // Predicated region
      $region53: #{bottleneck_forward.1} parent=51 // pred_check
        %p2916 = pneg %p210
      $region54: #{bottleneck_forward.1} parent=51 // pred_check_branch
        %2918 = sbr.rel (%p2916) target = $region56
      $region55: #{bottleneck_forward.1} parent=51 // pred_region
        _
      $region56: #{bottleneck_forward.1} parent=51 // pred_fallthru
        _
    $region52: #{bottleneck_forward.1} parent=5 // pred_fallthru
      _
    %p2919 = scmp.le.s32.totalorder 2, %s14
    // Predicated region
    $region57: #{bottleneck_forward.1} parent=5 // pred_check
      %p2920 = pneg %p2919
    $region58: #{bottleneck_forward.1} parent=5 // pred_check_branch
      %2922 = sbr.rel (%p2920) target = $region60
    $region59: #{bottleneck_forward.1} parent=5 // pred_region
      %s2923 = ssub.s32 %s14, 2
      // Predicated region
      $region61: #{bottleneck_forward.1} parent=59 // pred_check
        %p2924 = pneg %p216
      $region62: #{bottleneck_forward.1} parent=59 // pred_check_branch
        %2926 = sbr.rel (%p2924) target = $region64
      $region63: #{bottleneck_forward.1} parent=59 // pred_region
        %p2927 = scmp.lt.s32.totalorder %s20, 1
        %s2928 = scalar_select %p2927, %s20, 1
        %s2929 = smul.addr %s2928, 8
        %s2930 = smul.addr %s2929, 8
        %s2931 = scalar_lea.vmem %s8, %s2930
      $region64: #{bottleneck_forward.1} parent=59 // pred_fallthru
        _
    $region60: #{bottleneck_forward.1} parent=5 // pred_fallthru
      _
  $region6: #{bottleneck_forward.1} parent=0 // loop_footer
    %s18 = sadd.s32 1, %s14
  $region7: #{bottleneck_forward.1} parent=0 // loop_footer_branch
    %13 = sbr.rel target = $region3
  $region8: #{bottleneck_forward.1} parent=0 // loop_exit
    _

</llo_original>
